<compile_context>
chip_gen: v5e
topology: v5e:2x2
jax: 0.10.0
libtpu: 0.0.40
codegen_flags: <defaults>
</compile_context>

<pallas_src>
import jax
import jax.numpy as jnp
from jax.experimental import pallas as pl
from jax.experimental.pallas import tpu as pltpu

_LANES = 128          # lane width (points per vreg row)
_TILE_ROWS = 256      # max sublane rows per grid step -> 32768 pts / step
_NCORES = 1           # leading "parallel" grid axis; set to 2 on v7x megacore


def _morse_set_kernel(p_ref, g_ref, h_ref, acc_ref):
    """Accumulates per-point partial sums for one point set.

    p_ref:   (TR, 128)       SDF predictions
    g_ref:   (3, TR, 128)    gradient components (channels-first)
    h_ref:   (6, TR, 128)    symmetric Hessian upper triangle
                             [H00, H01, H02, H11, H12, H22]
    acc_ref: (1, 4, TR, 128) running vector accumulators:
             [0]=sum|pred| [1]=sum exp(-100|pred|) [2]=sum | ||g||-1 | [3]=sum|K|
    """
    @pl.when(pl.program_id(1) == 0)
    def _():
        acc_ref[...] = jnp.zeros_like(acc_ref)

    p = p_ref[...].astype(jnp.float32)
    g0 = g_ref[0].astype(jnp.float32)
    g1 = g_ref[1].astype(jnp.float32)
    g2 = g_ref[2].astype(jnp.float32)
    a = h_ref[0].astype(jnp.float32)   # H00
    b = h_ref[1].astype(jnp.float32)   # H01
    c = h_ref[2].astype(jnp.float32)   # H02
    d = h_ref[3].astype(jnp.float32)   # H11
    e = h_ref[4].astype(jnp.float32)   # H12
    f = h_ref[5].astype(jnp.float32)   # H22

    absp = jnp.abs(p)

    g0s, g1s, g2s = g0 * g0, g1 * g1, g2 * g2
    gn2 = g0s + g1s + g2s

    # Bordered-Hessian determinant via det([[H, g], [g^T, 0]]) = -g^T adj(H) g,
    # with the 6 adjugate entries of the *symmetric* H (exact for autograd H).
    adj00 = d * f - e * e
    adj11 = a * f - c * c
    adj22 = a * d - b * b
    adj01 = c * e - b * f
    adj02 = b * e - c * d
    adj12 = b * c - a * e
    det = -(g0s * adj00 + g1s * adj11 + g2s * adj22
            + 2.0 * ((g0 * g1) * adj01 + (g0 * g2) * adj02 + (g1 * g2) * adj12))

    denom = gn2 + 1e-12
    inv = pl.reciprocal(denom, approx=True)   # EUP seed (~12 bits)
    inv = inv * (2.0 - denom * inv)           # Newton step 1
    inv = inv * (2.0 - denom * inv)           # Newton step 2 -> ~f32 exact

    acc_ref[0, 0] += absp                                  # sdf partial
    acc_ref[0, 1] += jnp.exp(-100.0 * absp)                # inter partial
    acc_ref[0, 2] += jnp.abs(jnp.sqrt(gn2) - 1.0)          # eikonal partial
    acc_ref[0, 3] += jnp.abs(det * inv)                    # morse partial


def _set_partial_sums(pred, grad_cf, hess6_cf):
    """Partial sums [sum|p|, sum exp(-100|p|), sum | ||g||-1 |, sum |K|] for one set.

    pred:     (B, N)     float
    grad_cf:  (3, B, N)  gradient components, channels-first
    hess6_cf: (6, B, N)  symmetric Hessian upper triangle, channels-first
    All wrapper reshapes below are contiguous -> no extra HBM pass (only the
    ragged-tail jnp.pad is, see TODO above).
    """
    B, N = pred.shape
    m = B * N
    p = pred.reshape(m)
    g = grad_cf.reshape(3, m)
    h = hess6_cf.reshape(6, m)

    # Adaptive tile rows: shrink for small sets (less zero padding), cap at
    # _TILE_ROWS for big sets.  Multiple of 16 so bf16 inputs pack cleanly.
    rows_needed = -(-m // _LANES)
    if rows_needed < _TILE_ROWS * _NCORES:
        tr = max(16, -(-rows_needed // (_NCORES * 16)) * 16)
    else:
        tr = _TILE_ROWS
    tiles_per_core = max(1, -(-rows_needed // (tr * _NCORES)))
    rows_pad = _NCORES * tiles_per_core * tr
    m_pad = rows_pad * _LANES

    if m_pad != m:
        p = jnp.pad(p, (0, m_pad - m))
        g = jnp.pad(g, ((0, 0), (0, m_pad - m)))
        h = jnp.pad(h, ((0, 0), (0, m_pad - m)))

    p = p.reshape(rows_pad, _LANES)
    g = g.reshape(3, rows_pad, _LANES)
    h = h.reshape(6, rows_pad, _LANES)

    itemsize = jnp.dtype(pred.dtype).itemsize
    out = pl.pallas_call(
        _morse_set_kernel,
        out_shape=jax.ShapeDtypeStruct((_NCORES, 4, tr, _LANES), jnp.float32),
        grid=(_NCORES, tiles_per_core),
        in_specs=[
            pl.BlockSpec((tr, _LANES),
                         lambda ci, ti: (ci * tiles_per_core + ti, 0)),
            pl.BlockSpec((3, tr, _LANES),
                         lambda ci, ti: (0, ci * tiles_per_core + ti, 0)),
            pl.BlockSpec((6, tr, _LANES),
                         lambda ci, ti: (0, ci * tiles_per_core + ti, 0)),
        ],
        out_specs=pl.BlockSpec((1, 4, tr, _LANES),
                               lambda ci, ti: (ci, 0, 0, 0)),
        compiler_params=pltpu.CompilerParams(
            dimension_semantics=("parallel", "arbitrary")),
        cost_estimate=pl.CostEstimate(
            flops=60 * m_pad,
            transcendentals=3 * m_pad,
            bytes_accessed=10 * itemsize * m_pad
            + _NCORES * 4 * tr * _LANES * 4),
    )(p, g, h)

    sums = jnp.sum(out, axis=(0, 2, 3))
    # Exact correction for zero-padded lanes: they contribute exp(0)=1 to the
    # inter sum and |0-1|=1 to the eikonal sum; sdf & morse contributions are 0.
    if m_pad != m:
        pad = jnp.float32(m_pad - m)
        sums = sums.at[1].add(-pad).at[2].add(-pad)
    return sums, m


def morse_loss(manifold_pred, non_manifold_pred, mnfld_grad_cf, nonmnfld_grad_cf,
               mnfld_hess6_cf, nonmnfld_hess6_cf,
               weights=(3000.0, 100.0, 100.0, 50.0, 100.0, 10.0)):
    """JAX/Pallas equivalent of MorseLoss().forward with default options.

    manifold_pred:     (B, Nm)      float
    non_manifold_pred: (B, Nnm)     float
    mnfld_grad_cf:     (3, B, Nm)   gradient components, channels-first
    nonmnfld_grad_cf:  (3, B, Nnm)
    mnfld_hess6_cf:    (6, B, Nm)   symmetric Hessian upper triangle
                                    [H00, H01, H02, H11, H12, H22]
    nonmnfld_hess6_cf: (6, B, Nnm)
    """
    sums_m, cnt_m = _set_partial_sums(manifold_pred, mnfld_grad_cf,
                                      mnfld_hess6_cf)
    sums_nm, cnt_nm = _set_partial_sums(non_manifold_pred, nonmnfld_grad_cf,
                                        nonmnfld_hess6_cf)

    # tiny scalar epilogue (a handful of XLA scalar ops)
    sdf_term = sums_m[0] / cnt_m
    inter_term = sums_nm[1] / cnt_nm
    eikonal_term = (sums_nm[2] + sums_m[2]) / (cnt_m + cnt_nm)
    morse_term = 0.5 * (sums_nm[3] / cnt_nm + sums_m[3] / cnt_m)

    w = [float(x) for x in weights]
    w[2] = 0.0  # loss_type == 'siren_wo_n_w_morse' forces weights[2] = 0
    loss = (w[0] * sdf_term + w[1] * inter_term + w[3] * eikonal_term
            + w[5] * morse_term)

    zero = jnp.float32(0.0)
    loss_dict = {
        'loss': loss,
        'sdf_term': sdf_term,
        'inter_term': inter_term,
        'latent_reg_term': zero,   # latent_reg is None
        'eikonal_term': eikonal_term,
        'normals_loss': zero,      # mnfld_n_gt is None
        'div_loss': zero,
        'curv_loss': zero,
        'morse_term': morse_term,
        'min_surf_loss': zero,
    }
    return loss_dict, mnfld_grad_cf


# ----------------------------- validation only -----------------------------

def _full_hessian(h6_cf):
    """(6, B, N) upper-triangle channels -> (B, N, 3, 3) symmetric Hessian."""
    a, b, c, d, e, f = (h6_cf[i] for i in range(6))
    row0 = jnp.stack([a, b, c], axis=-1)
    row1 = jnp.stack([b, d, e], axis=-1)
    row2 = jnp.stack([c, e, f], axis=-1)
    return jnp.stack([row0, row1, row2], axis=-2)


def _reference(manifold_pred, non_manifold_pred, mnfld_grad, nonmnfld_grad,
               mnfld_hessian, nonmnfld_hessian,
               weights=(3000.0, 100.0, 100.0, 50.0, 100.0, 10.0)):
    """Pure-JAX mirror of the PyTorch math (validation only; torch layouts)."""
    sdf_term = jnp.mean(jnp.abs(manifold_pred))
    inter_term = jnp.mean(jnp.exp(-100.0 * jnp.abs(non_manifold_pred)))
    all_grads = jnp.concatenate([nonmnfld_grad, mnfld_grad], axis=-2)
    eikonal_term = jnp.mean(jnp.abs(jnp.linalg.norm(all_grads, axis=-1) - 1.0))

    def gauss(hess, grad):
        top = jnp.concatenate([hess, grad[..., None]], axis=-1)
        zero = jnp.zeros(grad.shape[:2] + (1, 1), grad.dtype)
        bottom = jnp.concatenate([grad[..., None, :], zero], axis=-1)
        M = jnp.concatenate([top, bottom], axis=-2)
        det = jnp.linalg.det(M)
        gn2 = jnp.linalg.norm(grad, axis=-1) ** 2
        return jnp.mean(jnp.abs(-1.0 / (gn2 + 1e-12) * det))

    morse_term = 0.5 * (gauss(nonmnfld_hessian, nonmnfld_grad) +
                        gauss(mnfld_hessian, mnfld_grad))
    loss = (weights[0] * sdf_term + weights[1] * inter_term +
            weights[3] * eikonal_term + weights[5] * morse_term)
    return {'loss': loss, 'sdf': sdf_term, 'inter': inter_term,
            'eik': eikonal_term, 'morse': morse_term}


if __name__ == "__main__":
    key = jax.random.PRNGKey(0)
    B, Nm, Nnm = 2, 4096, 3000   # Nnm exercises the ragged-tail correction path
    ks = jax.random.split(key, 6)
    manifold_pred = 0.1 * jax.random.normal(ks[0], (B, Nm), dtype=jnp.float32)
    non_manifold_pred = 0.1 * jax.random.normal(ks[1], (B, Nnm), dtype=jnp.float32)
    mnfld_grad_cf = jax.random.normal(ks[2], (3, B, Nm), dtype=jnp.float32)
    nonmnfld_grad_cf = jax.random.normal(ks[3], (3, B, Nnm), dtype=jnp.float32)
    # Autograd Hessians are symmetric: generate the 6 upper-triangle channels.
    mnfld_hess6_cf = jax.random.normal(ks[4], (6, B, Nm), dtype=jnp.float32)
    nonmnfld_hess6_cf = jax.random.normal(ks[5], (6, B, Nnm), dtype=jnp.float32)

    loss_fn = jax.jit(morse_loss)
    loss_dict, grad_out = loss_fn(manifold_pred, non_manifold_pred,
                                  mnfld_grad_cf, nonmnfld_grad_cf,
                                  mnfld_hess6_cf, nonmnfld_hess6_cf)
    jax.block_until_ready(loss_dict['loss'])

    # reference uses the original torch layouts (transposes are test-only code)
    ref = _reference(
        manifold_pred, non_manifold_pred,
        jnp.transpose(mnfld_grad_cf, (1, 2, 0)),
        jnp.transpose(nonmnfld_grad_cf, (1, 2, 0)),
        _full_hessian(mnfld_hess6_cf),
        _full_hessian(nonmnfld_hess6_cf))

    checks = [
        ('loss', loss_dict['loss'], ref['loss']),
        ('sdf_term', loss_dict['sdf_term'], ref['sdf']),
        ('inter_term', loss_dict['inter_term'], ref['inter']),
        ('eikonal_term', loss_dict['eikonal_term'], ref['eik']),
        ('morse_term', loss_dict['morse_term'], ref['morse']),
    ]
    for name, got, want in checks:
        assert jnp.allclose(got, want, rtol=1e-3, atol=1e-4), (name, got, want)

    print("KERNEL_OK")
</pallas_src>

<mosaic_0001>
module attributes {stable_mosaic.version = 11 : i64} {
  func.func @_morse_set_kernel(%arg0: i32, %arg1: i32, %arg2: memref<48x128xf32, #tpu.memory_space<vmem>>, %arg3: memref<3x48x128xf32, #tpu.memory_space<vmem>>, %arg4: memref<6x48x128xf32, #tpu.memory_space<vmem>>, %arg5: memref<1x4x48x128xf32, #tpu.memory_space<vmem>>) attributes {dimension_semantics = [#tpu.dimension_semantics<parallel>, #tpu.dimension_semantics<arbitrary>], iteration_bounds = array<i64: 1, 1>, scalar_prefetch = 0 : i64, scratch_operands = 0 : i64, tpu.core_type = #tpu.core_type<tc>, window_params = [{transform_indices = @transform_0, window_bounds = array<i64: 48, 128>}, {transform_indices = @transform_1, window_bounds = array<i64: 3, 48, 128>}, {transform_indices = @transform_2, window_bounds = array<i64: 6, 48, 128>}, {transform_indices = @transform_3, window_bounds = array<i64: 1, 4, 48, 128>}]} {
    %c0_i32 = arith.constant 0 : i32
    %0 = arith.cmpi eq, %arg1, %c0_i32 : i32
    %1 = arith.extui %0 : i1 to i32
    %c0_i32_0 = arith.constant 0 : i32
    %2 = arith.cmpi ne, %1, %c0_i32_0 : i32
    scf.if %2 {
      %cst_62 = arith.constant 0.000000e+00 : f32
      %108 = vector.broadcast %cst_62 : f32 to vector<1x4x48x128xf32>
      %c0_63 = arith.constant 0 : index
      %c0_64 = arith.constant 0 : index
      %c0_65 = arith.constant 0 : index
      %c0_66 = arith.constant 0 : index
      %109 = vector.load %arg5[%c0_63, %c0_64, %c0_65, %c0_66] : memref<1x4x48x128xf32, #tpu.memory_space<vmem>>, vector<1x4x48x128xf32>
      tpu.vector_store %arg5[%c0_63, %c0_64, %c0_65, %c0_66], %108 {strides = array<i32>} : memref<1x4x48x128xf32, #tpu.memory_space<vmem>>, vector<1x4x48x128xf32>,
    } else {
    }
    %c0 = arith.constant 0 : index
    %c0_1 = arith.constant 0 : index
    %3 = vector.load %arg2[%c0, %c0_1] : memref<48x128xf32, #tpu.memory_space<vmem>>, vector<48x128xf32>
    %c0_2 = arith.constant 0 : index
    %c0_3 = arith.constant 0 : index
    %c0_4 = arith.constant 0 : index
    %4 = vector.load %arg3[%c0_2, %c0_3, %c0_4] : memref<3x48x128xf32, #tpu.memory_space<vmem>>, vector<1x48x128xf32>
    %5 = vector.shape_cast %4 : vector<1x48x128xf32> to vector<48x128xf32>
    %c1 = arith.constant 1 : index
    %c0_5 = arith.constant 0 : index
    %c0_6 = arith.constant 0 : index
    %6 = vector.load %arg3[%c1, %c0_5, %c0_6] : memref<3x48x128xf32, #tpu.memory_space<vmem>>, vector<1x48x128xf32>
    %7 = vector.shape_cast %6 : vector<1x48x128xf32> to vector<48x128xf32>
    %c2 = arith.constant 2 : index
    %c0_7 = arith.constant 0 : index
    %c0_8 = arith.constant 0 : index
    %8 = vector.load %arg3[%c2, %c0_7, %c0_8] : memref<3x48x128xf32, #tpu.memory_space<vmem>>, vector<1x48x128xf32>
    %9 = vector.shape_cast %8 : vector<1x48x128xf32> to vector<48x128xf32>
    %c0_9 = arith.constant 0 : index
    %c0_10 = arith.constant 0 : index
    %c0_11 = arith.constant 0 : index
    %10 = vector.load %arg4[%c0_9, %c0_10, %c0_11] : memref<6x48x128xf32, #tpu.memory_space<vmem>>, vector<1x48x128xf32>
    %11 = vector.shape_cast %10 : vector<1x48x128xf32> to vector<48x128xf32>
    %c1_12 = arith.constant 1 : index
    %c0_13 = arith.constant 0 : index
    %c0_14 = arith.constant 0 : index
    %12 = vector.load %arg4[%c1_12, %c0_13, %c0_14] : memref<6x48x128xf32, #tpu.memory_space<vmem>>, vector<1x48x128xf32>
    %13 = vector.shape_cast %12 : vector<1x48x128xf32> to vector<48x128xf32>
    %c2_15 = arith.constant 2 : index
    %c0_16 = arith.constant 0 : index
    %c0_17 = arith.constant 0 : index
    %14 = vector.load %arg4[%c2_15, %c0_16, %c0_17] : memref<6x48x128xf32, #tpu.memory_space<vmem>>, vector<1x48x128xf32>
    %15 = vector.shape_cast %14 : vector<1x48x128xf32> to vector<48x128xf32>
    %c3 = arith.constant 3 : index
    %c0_18 = arith.constant 0 : index
    %c0_19 = arith.constant 0 : index
    %16 = vector.load %arg4[%c3, %c0_18, %c0_19] : memref<6x48x128xf32, #tpu.memory_space<vmem>>, vector<1x48x128xf32>
    %17 = vector.shape_cast %16 : vector<1x48x128xf32> to vector<48x128xf32>
    %c4 = arith.constant 4 : index
    %c0_20 = arith.constant 0 : index
    %c0_21 = arith.constant 0 : index
    %18 = vector.load %arg4[%c4, %c0_20, %c0_21] : memref<6x48x128xf32, #tpu.memory_space<vmem>>, vector<1x48x128xf32>
    %19 = vector.shape_cast %18 : vector<1x48x128xf32> to vector<48x128xf32>
    %c5 = arith.constant 5 : index
    %c0_22 = arith.constant 0 : index
    %c0_23 = arith.constant 0 : index
    %20 = vector.load %arg4[%c5, %c0_22, %c0_23] : memref<6x48x128xf32, #tpu.memory_space<vmem>>, vector<1x48x128xf32>
    %21 = vector.shape_cast %20 : vector<1x48x128xf32> to vector<48x128xf32>
    %22 = math.absf %3 : vector<48x128xf32>
    %23 = arith.mulf %5, %5 : vector<48x128xf32>
    %24 = arith.mulf %7, %7 : vector<48x128xf32>
    %25 = arith.mulf %9, %9 : vector<48x128xf32>
    %26 = arith.addf %23, %24 : vector<48x128xf32>
    %27 = arith.addf %26, %25 : vector<48x128xf32>
    %28 = arith.mulf %17, %21 : vector<48x128xf32>
    %29 = arith.mulf %19, %19 : vector<48x128xf32>
    %30 = arith.subf %28, %29 : vector<48x128xf32>
    %31 = arith.mulf %11, %21 : vector<48x128xf32>
    %32 = arith.mulf %15, %15 : vector<48x128xf32>
    %33 = arith.subf %31, %32 : vector<48x128xf32>
    %34 = arith.mulf %11, %17 : vector<48x128xf32>
    %35 = arith.mulf %13, %13 : vector<48x128xf32>
    %36 = arith.subf %34, %35 : vector<48x128xf32>
    %37 = arith.mulf %15, %19 : vector<48x128xf32>
    %38 = arith.mulf %13, %21 : vector<48x128xf32>
    %39 = arith.subf %37, %38 : vector<48x128xf32>
    %40 = arith.mulf %13, %19 : vector<48x128xf32>
    %41 = arith.mulf %15, %17 : vector<48x128xf32>
    %42 = arith.subf %40, %41 : vector<48x128xf32>
    %43 = arith.mulf %13, %15 : vector<48x128xf32>
    %44 = arith.mulf %11, %19 : vector<48x128xf32>
    %45 = arith.subf %43, %44 : vector<48x128xf32>
    %46 = arith.mulf %23, %30 : vector<48x128xf32>
    %47 = arith.mulf %24, %33 : vector<48x128xf32>
    %48 = arith.addf %46, %47 : vector<48x128xf32>
    %49 = arith.mulf %25, %36 : vector<48x128xf32>
    %50 = arith.addf %48, %49 : vector<48x128xf32>
    %51 = arith.mulf %5, %7 : vector<48x128xf32>
    %52 = arith.mulf %51, %39 : vector<48x128xf32>
    %53 = arith.mulf %5, %9 : vector<48x128xf32>
    %54 = arith.mulf %53, %42 : vector<48x128xf32>
    %55 = arith.addf %52, %54 : vector<48x128xf32>
    %56 = arith.mulf %7, %9 : vector<48x128xf32>
    %57 = arith.mulf %56, %45 : vector<48x128xf32>
    %58 = arith.addf %55, %57 : vector<48x128xf32>
    %cst = arith.constant 2.000000e+00 : f32
    %59 = vector.broadcast %cst : f32 to vector<48x128xf32>
    %60 = arith.mulf %59, %58 : vector<48x128xf32>
    %61 = arith.addf %50, %60 : vector<48x128xf32>
    %cst_24 = arith.constant 0.000000e+00 : f32
    %62 = vector.broadcast %cst_24 : f32 to vector<48x128xf32>
    %63 = arith.subf %62, %61 : vector<48x128xf32>
    %cst_25 = arith.constant 9.99999996E-13 : f32
    %64 = vector.broadcast %cst_25 : f32 to vector<48x128xf32>
    %65 = arith.addf %27, %64 : vector<48x128xf32>
    %66 = tpu.reciprocal %65 {approx = true} : vector<48x128xf32> -> vector<48x128xf32>
    %67 = arith.mulf %65, %66 : vector<48x128xf32>
    %cst_26 = arith.constant 2.000000e+00 : f32
    %68 = vector.broadcast %cst_26 : f32 to vector<48x128xf32>
    %69 = arith.subf %68, %67 : vector<48x128xf32>
    %70 = arith.mulf %66, %69 : vector<48x128xf32>
    %71 = arith.mulf %65, %70 : vector<48x128xf32>
    %cst_27 = arith.constant 2.000000e+00 : f32
    %72 = vector.broadcast %cst_27 : f32 to vector<48x128xf32>
    %73 = arith.subf %72, %71 : vector<48x128xf32>
    %74 = arith.mulf %70, %73 : vector<48x128xf32>
    %c0_28 = arith.constant 0 : index
    %c0_29 = arith.constant 0 : index
    %c0_30 = arith.constant 0 : index
    %c0_31 = arith.constant 0 : index
    %75 = vector.load %arg5[%c0_28, %c0_29, %c0_30, %c0_31] : memref<1x4x48x128xf32, #tpu.memory_space<vmem>>, vector<1x1x48x128xf32>
    %76 = vector.shape_cast %75 : vector<1x1x48x128xf32> to vector<48x128xf32>
    %77 = arith.addf %76, %22 : vector<48x128xf32>
    %c0_32 = arith.constant 0 : index
    %c0_33 = arith.constant 0 : index
    %c0_34 = arith.constant 0 : index
    %c0_35 = arith.constant 0 : index
    %78 = vector.load %arg5[%c0_32, %c0_33, %c0_34, %c0_35] : memref<1x4x48x128xf32, #tpu.memory_space<vmem>>, vector<1x1x48x128xf32>
    %79 = vector.shape_cast %78 : vector<1x1x48x128xf32> to vector<48x128xf32>
    %80 = vector.shape_cast %77 : vector<48x128xf32> to vector<1x1x48x128xf32>
    tpu.vector_store %arg5[%c0_32, %c0_33, %c0_34, %c0_35], %80 {strides = array<i32>} : memref<1x4x48x128xf32, #tpu.memory_space<vmem>>, vector<1x1x48x128xf32>,
    %c0_36 = arith.constant 0 : index
    %c1_37 = arith.constant 1 : index
    %c0_38 = arith.constant 0 : index
    %c0_39 = arith.constant 0 : index
    %81 = vector.load %arg5[%c0_36, %c1_37, %c0_38, %c0_39] : memref<1x4x48x128xf32, #tpu.memory_space<vmem>>, vector<1x1x48x128xf32>
    %82 = vector.shape_cast %81 : vector<1x1x48x128xf32> to vector<48x128xf32>
    %cst_40 = arith.constant -1.000000e+02 : f32
    %83 = vector.broadcast %cst_40 : f32 to vector<48x128xf32>
    %84 = arith.mulf %83, %22 : vector<48x128xf32>
    %85 = math.exp %84 : vector<48x128xf32>
    %86 = arith.addf %82, %85 : vector<48x128xf32>
    %c0_41 = arith.constant 0 : index
    %c1_42 = arith.constant 1 : index
    %c0_43 = arith.constant 0 : index
    %c0_44 = arith.constant 0 : index
    %87 = vector.load %arg5[%c0_41, %c1_42, %c0_43, %c0_44] : memref<1x4x48x128xf32, #tpu.memory_space<vmem>>, vector<1x1x48x128xf32>
    %88 = vector.shape_cast %87 : vector<1x1x48x128xf32> to vector<48x128xf32>
    %89 = vector.shape_cast %86 : vector<48x128xf32> to vector<1x1x48x128xf32>
    tpu.vector_store %arg5[%c0_41, %c1_42, %c0_43, %c0_44], %89 {strides = array<i32>} : memref<1x4x48x128xf32, #tpu.memory_space<vmem>>, vector<1x1x48x128xf32>,
    %c0_45 = arith.constant 0 : index
    %c2_46 = arith.constant 2 : index
    %c0_47 = arith.constant 0 : index
    %c0_48 = arith.constant 0 : index
    %90 = vector.load %arg5[%c0_45, %c2_46, %c0_47, %c0_48] : memref<1x4x48x128xf32, #tpu.memory_space<vmem>>, vector<1x1x48x128xf32>
    %91 = vector.shape_cast %90 : vector<1x1x48x128xf32> to vector<48x128xf32>
    %92 = math.sqrt %27 : vector<48x128xf32>
    %cst_49 = arith.constant 1.000000e+00 : f32
    %93 = vector.broadcast %cst_49 : f32 to vector<48x128xf32>
    %94 = arith.subf %92, %93 : vector<48x128xf32>
    %95 = math.absf %94 : vector<48x128xf32>
    %96 = arith.addf %91, %95 : vector<48x128xf32>
    %c0_50 = arith.constant 0 : index
    %c2_51 = arith.constant 2 : index
    %c0_52 = arith.constant 0 : index
    %c0_53 = arith.constant 0 : index
    %97 = vector.load %arg5[%c0_50, %c2_51, %c0_52, %c0_53] : memref<1x4x48x128xf32, #tpu.memory_space<vmem>>, vector<1x1x48x128xf32>
    %98 = vector.shape_cast %97 : vector<1x1x48x128xf32> to vector<48x128xf32>
    %99 = vector.shape_cast %96 : vector<48x128xf32> to vector<1x1x48x128xf32>
    tpu.vector_store %arg5[%c0_50, %c2_51, %c0_52, %c0_53], %99 {strides = array<i32>} : memref<1x4x48x128xf32, #tpu.memory_space<vmem>>, vector<1x1x48x128xf32>,
    %c0_54 = arith.constant 0 : index
    %c3_55 = arith.constant 3 : index
    %c0_56 = arith.constant 0 : index
    %c0_57 = arith.constant 0 : index
    %100 = vector.load %arg5[%c0_54, %c3_55, %c0_56, %c0_57] : memref<1x4x48x128xf32, #tpu.memory_space<vmem>>, vector<1x1x48x128xf32>
    %101 = vector.shape_cast %100 : vector<1x1x48x128xf32> to vector<48x128xf32>
    %102 = arith.mulf %63, %74 : vector<48x128xf32>
    %103 = math.absf %102 : vector<48x128xf32>
    %104 = arith.addf %101, %103 : vector<48x128xf32>
    %c0_58 = arith.constant 0 : index
    %c3_59 = arith.constant 3 : index
    %c0_60 = arith.constant 0 : index
    %c0_61 = arith.constant 0 : index
    %105 = vector.load %arg5[%c0_58, %c3_59, %c0_60, %c0_61] : memref<1x4x48x128xf32, #tpu.memory_space<vmem>>, vector<1x1x48x128xf32>
    %106 = vector.shape_cast %105 : vector<1x1x48x128xf32> to vector<48x128xf32>
    %107 = vector.shape_cast %104 : vector<48x128xf32> to vector<1x1x48x128xf32>
    tpu.vector_store %arg5[%c0_58, %c3_59, %c0_60, %c0_61], %107 {strides = array<i32>} : memref<1x4x48x128xf32, #tpu.memory_space<vmem>>, vector<1x1x48x128xf32>,
    return
  }
  func.func @transform_0(%arg0: i32, %arg1: i32) -> (i32, i32) {
    %c1_i32 = arith.constant 1 : i32
    %0 = arith.muli %arg0, %c1_i32 : i32
    %1 = arith.addi %0, %arg1 : i32
    %c0_i32 = arith.constant 0 : i32
    %c0_i32_0 = arith.constant 0 : i32
    return %1, %c0_i32 : i32, i32
  }
  func.func @transform_1(%arg0: i32, %arg1: i32) -> (i32, i32, i32) {
    %c1_i32 = arith.constant 1 : i32
    %0 = arith.muli %arg0, %c1_i32 : i32
    %1 = arith.addi %0, %arg1 : i32
    %c0_i32 = arith.constant 0 : i32
    %c0_i32_0 = arith.constant 0 : i32
    %c0_i32_1 = arith.constant 0 : i32
    return %c0_i32, %1, %c0_i32_0 : i32, i32, i32
  }
  func.func @transform_2(%arg0: i32, %arg1: i32) -> (i32, i32, i32) {
    %c1_i32 = arith.constant 1 : i32
    %0 = arith.muli %arg0, %c1_i32 : i32
    %1 = arith.addi %0, %arg1 : i32
    %c0_i32 = arith.constant 0 : i32
    %c0_i32_0 = arith.constant 0 : i32
    %c0_i32_1 = arith.constant 0 : i32
    return %c0_i32, %1, %c0_i32_0 : i32, i32, i32
  }
  func.func @transform_3(%arg0: i32, %arg1: i32) -> (i32, i32, i32, i32) {
    %c0_i32 = arith.constant 0 : i32
    %c0_i32_0 = arith.constant 0 : i32
    %c0_i32_1 = arith.constant 0 : i32
    %c0_i32_2 = arith.constant 0 : i32
    return %arg0, %c0_i32, %c0_i32_0, %c0_i32_1 : i32, i32, i32, i32
  }
}

module attributes {stable_mosaic.version = 11 : i64} {
  func.func @_morse_set_kernel(%arg0: i32, %arg1: i32, %arg2: memref<64x128xf32, #tpu.memory_space<vmem>>, %arg3: memref<3x64x128xf32, #tpu.memory_space<vmem>>, %arg4: memref<6x64x128xf32, #tpu.memory_space<vmem>>, %arg5: memref<1x4x64x128xf32, #tpu.memory_space<vmem>>) attributes {dimension_semantics = [#tpu.dimension_semantics<parallel>, #tpu.dimension_semantics<arbitrary>], iteration_bounds = array<i64: 1, 1>, scalar_prefetch = 0 : i64, scratch_operands = 0 : i64, tpu.core_type = #tpu.core_type<tc>, window_params = [{transform_indices = @transform_0, window_bounds = array<i64: 64, 128>}, {transform_indices = @transform_1, window_bounds = array<i64: 3, 64, 128>}, {transform_indices = @transform_2, window_bounds = array<i64: 6, 64, 128>}, {transform_indices = @transform_3, window_bounds = array<i64: 1, 4, 64, 128>}]} {
    %c0_i32 = arith.constant 0 : i32
    %0 = arith.cmpi eq, %arg1, %c0_i32 : i32
    %1 = arith.extui %0 : i1 to i32
    %c0_i32_0 = arith.constant 0 : i32
    %2 = arith.cmpi ne, %1, %c0_i32_0 : i32
    scf.if %2 {
      %cst_62 = arith.constant 0.000000e+00 : f32
      %108 = vector.broadcast %cst_62 : f32 to vector<1x4x64x128xf32>
      %c0_63 = arith.constant 0 : index
      %c0_64 = arith.constant 0 : index
      %c0_65 = arith.constant 0 : index
      %c0_66 = arith.constant 0 : index
      %109 = vector.load %arg5[%c0_63, %c0_64, %c0_65, %c0_66] : memref<1x4x64x128xf32, #tpu.memory_space<vmem>>, vector<1x4x64x128xf32>
      tpu.vector_store %arg5[%c0_63, %c0_64, %c0_65, %c0_66], %108 {strides = array<i32>} : memref<1x4x64x128xf32, #tpu.memory_space<vmem>>, vector<1x4x64x128xf32>,
    } else {
    }
    %c0 = arith.constant 0 : index
    %c0_1 = arith.constant 0 : index
    %3 = vector.load %arg2[%c0, %c0_1] : memref<64x128xf32, #tpu.memory_space<vmem>>, vector<64x128xf32>
    %c0_2 = arith.constant 0 : index
    %c0_3 = arith.constant 0 : index
    %c0_4 = arith.constant 0 : index
    %4 = vector.load %arg3[%c0_2, %c0_3, %c0_4] : memref<3x64x128xf32, #tpu.memory_space<vmem>>, vector<1x64x128xf32>
    %5 = vector.shape_cast %4 : vector<1x64x128xf32> to vector<64x128xf32>
    %c1 = arith.constant 1 : index
    %c0_5 = arith.constant 0 : index
    %c0_6 = arith.constant 0 : index
    %6 = vector.load %arg3[%c1, %c0_5, %c0_6] : memref<3x64x128xf32, #tpu.memory_space<vmem>>, vector<1x64x128xf32>
    %7 = vector.shape_cast %6 : vector<1x64x128xf32> to vector<64x128xf32>
    %c2 = arith.constant 2 : index
    %c0_7 = arith.constant 0 : index
    %c0_8 = arith.constant 0 : index
    %8 = vector.load %arg3[%c2, %c0_7, %c0_8] : memref<3x64x128xf32, #tpu.memory_space<vmem>>, vector<1x64x128xf32>
    %9 = vector.shape_cast %8 : vector<1x64x128xf32> to vector<64x128xf32>
    %c0_9 = arith.constant 0 : index
    %c0_10 = arith.constant 0 : index
    %c0_11 = arith.constant 0 : index
    %10 = vector.load %arg4[%c0_9, %c0_10, %c0_11] : memref<6x64x128xf32, #tpu.memory_space<vmem>>, vector<1x64x128xf32>
    %11 = vector.shape_cast %10 : vector<1x64x128xf32> to vector<64x128xf32>
    %c1_12 = arith.constant 1 : index
    %c0_13 = arith.constant 0 : index
    %c0_14 = arith.constant 0 : index
    %12 = vector.load %arg4[%c1_12, %c0_13, %c0_14] : memref<6x64x128xf32, #tpu.memory_space<vmem>>, vector<1x64x128xf32>
    %13 = vector.shape_cast %12 : vector<1x64x128xf32> to vector<64x128xf32>
    %c2_15 = arith.constant 2 : index
    %c0_16 = arith.constant 0 : index
    %c0_17 = arith.constant 0 : index
    %14 = vector.load %arg4[%c2_15, %c0_16, %c0_17] : memref<6x64x128xf32, #tpu.memory_space<vmem>>, vector<1x64x128xf32>
    %15 = vector.shape_cast %14 : vector<1x64x128xf32> to vector<64x128xf32>
    %c3 = arith.constant 3 : index
    %c0_18 = arith.constant 0 : index
    %c0_19 = arith.constant 0 : index
    %16 = vector.load %arg4[%c3, %c0_18, %c0_19] : memref<6x64x128xf32, #tpu.memory_space<vmem>>, vector<1x64x128xf32>
    %17 = vector.shape_cast %16 : vector<1x64x128xf32> to vector<64x128xf32>
    %c4 = arith.constant 4 : index
    %c0_20 = arith.constant 0 : index
    %c0_21 = arith.constant 0 : index
    %18 = vector.load %arg4[%c4, %c0_20, %c0_21] : memref<6x64x128xf32, #tpu.memory_space<vmem>>, vector<1x64x128xf32>
    %19 = vector.shape_cast %18 : vector<1x64x128xf32> to vector<64x128xf32>
    %c5 = arith.constant 5 : index
    %c0_22 = arith.constant 0 : index
    %c0_23 = arith.constant 0 : index
    %20 = vector.load %arg4[%c5, %c0_22, %c0_23] : memref<6x64x128xf32, #tpu.memory_space<vmem>>, vector<1x64x128xf32>
    %21 = vector.shape_cast %20 : vector<1x64x128xf32> to vector<64x128xf32>
    %22 = math.absf %3 : vector<64x128xf32>
    %23 = arith.mulf %5, %5 : vector<64x128xf32>
    %24 = arith.mulf %7, %7 : vector<64x128xf32>
    %25 = arith.mulf %9, %9 : vector<64x128xf32>
    %26 = arith.addf %23, %24 : vector<64x128xf32>
    %27 = arith.addf %26, %25 : vector<64x128xf32>
    %28 = arith.mulf %17, %21 : vector<64x128xf32>
    %29 = arith.mulf %19, %19 : vector<64x128xf32>
    %30 = arith.subf %28, %29 : vector<64x128xf32>
    %31 = arith.mulf %11, %21 : vector<64x128xf32>
    %32 = arith.mulf %15, %15 : vector<64x128xf32>
    %33 = arith.subf %31, %32 : vector<64x128xf32>
    %34 = arith.mulf %11, %17 : vector<64x128xf32>
    %35 = arith.mulf %13, %13 : vector<64x128xf32>
    %36 = arith.subf %34, %35 : vector<64x128xf32>
    %37 = arith.mulf %15, %19 : vector<64x128xf32>
    %38 = arith.mulf %13, %21 : vector<64x128xf32>
    %39 = arith.subf %37, %38 : vector<64x128xf32>
    %40 = arith.mulf %13, %19 : vector<64x128xf32>
    %41 = arith.mulf %15, %17 : vector<64x128xf32>
    %42 = arith.subf %40, %41 : vector<64x128xf32>
    %43 = arith.mulf %13, %15 : vector<64x128xf32>
    %44 = arith.mulf %11, %19 : vector<64x128xf32>
    %45 = arith.subf %43, %44 : vector<64x128xf32>
    %46 = arith.mulf %23, %30 : vector<64x128xf32>
    %47 = arith.mulf %24, %33 : vector<64x128xf32>
    %48 = arith.addf %46, %47 : vector<64x128xf32>
    %49 = arith.mulf %25, %36 : vector<64x128xf32>
    %50 = arith.addf %48, %49 : vector<64x128xf32>
    %51 = arith.mulf %5, %7 : vector<64x128xf32>
    %52 = arith.mulf %51, %39 : vector<64x128xf32>
    %53 = arith.mulf %5, %9 : vector<64x128xf32>
    %54 = arith.mulf %53, %42 : vector<64x128xf32>
    %55 = arith.addf %52, %54 : vector<64x128xf32>
    %56 = arith.mulf %7, %9 : vector<64x128xf32>
    %57 = arith.mulf %56, %45 : vector<64x128xf32>
    %58 = arith.addf %55, %57 : vector<64x128xf32>
    %cst = arith.constant 2.000000e+00 : f32
    %59 = vector.broadcast %cst : f32 to vector<64x128xf32>
    %60 = arith.mulf %59, %58 : vector<64x128xf32>
    %61 = arith.addf %50, %60 : vector<64x128xf32>
    %cst_24 = arith.constant 0.000000e+00 : f32
    %62 = vector.broadcast %cst_24 : f32 to vector<64x128xf32>
    %63 = arith.subf %62, %61 : vector<64x128xf32>
    %cst_25 = arith.constant 9.99999996E-13 : f32
    %64 = vector.broadcast %cst_25 : f32 to vector<64x128xf32>
    %65 = arith.addf %27, %64 : vector<64x128xf32>
    %66 = tpu.reciprocal %65 {approx = true} : vector<64x128xf32> -> vector<64x128xf32>
    %67 = arith.mulf %65, %66 : vector<64x128xf32>
    %cst_26 = arith.constant 2.000000e+00 : f32
    %68 = vector.broadcast %cst_26 : f32 to vector<64x128xf32>
    %69 = arith.subf %68, %67 : vector<64x128xf32>
    %70 = arith.mulf %66, %69 : vector<64x128xf32>
    %71 = arith.mulf %65, %70 : vector<64x128xf32>
    %cst_27 = arith.constant 2.000000e+00 : f32
    %72 = vector.broadcast %cst_27 : f32 to vector<64x128xf32>
    %73 = arith.subf %72, %71 : vector<64x128xf32>
    %74 = arith.mulf %70, %73 : vector<64x128xf32>
    %c0_28 = arith.constant 0 : index
    %c0_29 = arith.constant 0 : index
    %c0_30 = arith.constant 0 : index
    %c0_31 = arith.constant 0 : index
    %75 = vector.load %arg5[%c0_28, %c0_29, %c0_30, %c0_31] : memref<1x4x64x128xf32, #tpu.memory_space<vmem>>, vector<1x1x64x128xf32>
    %76 = vector.shape_cast %75 : vector<1x1x64x128xf32> to vector<64x128xf32>
    %77 = arith.addf %76, %22 : vector<64x128xf32>
    %c0_32 = arith.constant 0 : index
    %c0_33 = arith.constant 0 : index
    %c0_34 = arith.constant 0 : index
    %c0_35 = arith.constant 0 : index
    %78 = vector.load %arg5[%c0_32, %c0_33, %c0_34, %c0_35] : memref<1x4x64x128xf32, #tpu.memory_space<vmem>>, vector<1x1x64x128xf32>
    %79 = vector.shape_cast %78 : vector<1x1x64x128xf32> to vector<64x128xf32>
    %80 = vector.shape_cast %77 : vector<64x128xf32> to vector<1x1x64x128xf32>
    tpu.vector_store %arg5[%c0_32, %c0_33, %c0_34, %c0_35], %80 {strides = array<i32>} : memref<1x4x64x128xf32, #tpu.memory_space<vmem>>, vector<1x1x64x128xf32>,
    %c0_36 = arith.constant 0 : index
    %c1_37 = arith.constant 1 : index
    %c0_38 = arith.constant 0 : index
    %c0_39 = arith.constant 0 : index
    %81 = vector.load %arg5[%c0_36, %c1_37, %c0_38, %c0_39] : memref<1x4x64x128xf32, #tpu.memory_space<vmem>>, vector<1x1x64x128xf32>
    %82 = vector.shape_cast %81 : vector<1x1x64x128xf32> to vector<64x128xf32>
    %cst_40 = arith.constant -1.000000e+02 : f32
    %83 = vector.broadcast %cst_40 : f32 to vector<64x128xf32>
    %84 = arith.mulf %83, %22 : vector<64x128xf32>
    %85 = math.exp %84 : vector<64x128xf32>
    %86 = arith.addf %82, %85 : vector<64x128xf32>
    %c0_41 = arith.constant 0 : index
    %c1_42 = arith.constant 1 : index
    %c0_43 = arith.constant 0 : index
    %c0_44 = arith.constant 0 : index
    %87 = vector.load %arg5[%c0_41, %c1_42, %c0_43, %c0_44] : memref<1x4x64x128xf32, #tpu.memory_space<vmem>>, vector<1x1x64x128xf32>
    %88 = vector.shape_cast %87 : vector<1x1x64x128xf32> to vector<64x128xf32>
    %89 = vector.shape_cast %86 : vector<64x128xf32> to vector<1x1x64x128xf32>
    tpu.vector_store %arg5[%c0_41, %c1_42, %c0_43, %c0_44], %89 {strides = array<i32>} : memref<1x4x64x128xf32, #tpu.memory_space<vmem>>, vector<1x1x64x128xf32>,
    %c0_45 = arith.constant 0 : index
    %c2_46 = arith.constant 2 : index
    %c0_47 = arith.constant 0 : index
    %c0_48 = arith.constant 0 : index
    %90 = vector.load %arg5[%c0_45, %c2_46, %c0_47, %c0_48] : memref<1x4x64x128xf32, #tpu.memory_space<vmem>>, vector<1x1x64x128xf32>
    %91 = vector.shape_cast %90 : vector<1x1x64x128xf32> to vector<64x128xf32>
    %92 = math.sqrt %27 : vector<64x128xf32>
    %cst_49 = arith.constant 1.000000e+00 : f32
    %93 = vector.broadcast %cst_49 : f32 to vector<64x128xf32>
    %94 = arith.subf %92, %93 : vector<64x128xf32>
    %95 = math.absf %94 : vector<64x128xf32>
    %96 = arith.addf %91, %95 : vector<64x128xf32>
    %c0_50 = arith.constant 0 : index
    %c2_51 = arith.constant 2 : index
    %c0_52 = arith.constant 0 : index
    %c0_53 = arith.constant 0 : index
    %97 = vector.load %arg5[%c0_50, %c2_51, %c0_52, %c0_53] : memref<1x4x64x128xf32, #tpu.memory_space<vmem>>, vector<1x1x64x128xf32>
    %98 = vector.shape_cast %97 : vector<1x1x64x128xf32> to vector<64x128xf32>
    %99 = vector.shape_cast %96 : vector<64x128xf32> to vector<1x1x64x128xf32>
    tpu.vector_store %arg5[%c0_50, %c2_51, %c0_52, %c0_53], %99 {strides = array<i32>} : memref<1x4x64x128xf32, #tpu.memory_space<vmem>>, vector<1x1x64x128xf32>,
    %c0_54 = arith.constant 0 : index
    %c3_55 = arith.constant 3 : index
    %c0_56 = arith.constant 0 : index
    %c0_57 = arith.constant 0 : index
    %100 = vector.load %arg5[%c0_54, %c3_55, %c0_56, %c0_57] : memref<1x4x64x128xf32, #tpu.memory_space<vmem>>, vector<1x1x64x128xf32>
    %101 = vector.shape_cast %100 : vector<1x1x64x128xf32> to vector<64x128xf32>
    %102 = arith.mulf %63, %74 : vector<64x128xf32>
    %103 = math.absf %102 : vector<64x128xf32>
    %104 = arith.addf %101, %103 : vector<64x128xf32>
    %c0_58 = arith.constant 0 : index
    %c3_59 = arith.constant 3 : index
    %c0_60 = arith.constant 0 : index
    %c0_61 = arith.constant 0 : index
    %105 = vector.load %arg5[%c0_58, %c3_59, %c0_60, %c0_61] : memref<1x4x64x128xf32, #tpu.memory_space<vmem>>, vector<1x1x64x128xf32>
    %106 = vector.shape_cast %105 : vector<1x1x64x128xf32> to vector<64x128xf32>
    %107 = vector.shape_cast %104 : vector<64x128xf32> to vector<1x1x64x128xf32>
    tpu.vector_store %arg5[%c0_58, %c3_59, %c0_60, %c0_61], %107 {strides = array<i32>} : memref<1x4x64x128xf32, #tpu.memory_space<vmem>>, vector<1x1x64x128xf32>,
    return
  }
  func.func @transform_0(%arg0: i32, %arg1: i32) -> (i32, i32) {
    %c1_i32 = arith.constant 1 : i32
    %0 = arith.muli %arg0, %c1_i32 : i32
    %1 = arith.addi %0, %arg1 : i32
    %c0_i32 = arith.constant 0 : i32
    %c0_i32_0 = arith.constant 0 : i32
    return %1, %c0_i32 : i32, i32
  }
  func.func @transform_1(%arg0: i32, %arg1: i32) -> (i32, i32, i32) {
    %c1_i32 = arith.constant 1 : i32
    %0 = arith.muli %arg0, %c1_i32 : i32
    %1 = arith.addi %0, %arg1 : i32
    %c0_i32 = arith.constant 0 : i32
    %c0_i32_0 = arith.constant 0 : i32
    %c0_i32_1 = arith.constant 0 : i32
    return %c0_i32, %1, %c0_i32_0 : i32, i32, i32
  }
  func.func @transform_2(%arg0: i32, %arg1: i32) -> (i32, i32, i32) {
    %c1_i32 = arith.constant 1 : i32
    %0 = arith.muli %arg0, %c1_i32 : i32
    %1 = arith.addi %0, %arg1 : i32
    %c0_i32 = arith.constant 0 : i32
    %c0_i32_0 = arith.constant 0 : i32
    %c0_i32_1 = arith.constant 0 : i32
    return %c0_i32, %1, %c0_i32_0 : i32, i32, i32
  }
  func.func @transform_3(%arg0: i32, %arg1: i32) -> (i32, i32, i32, i32) {
    %c0_i32 = arith.constant 0 : i32
    %c0_i32_0 = arith.constant 0 : i32
    %c0_i32_1 = arith.constant 0 : i32
    %c0_i32_2 = arith.constant 0 : i32
    return %arg0, %c0_i32, %c0_i32_0, %c0_i32_1 : i32, i32, i32, i32
  }
}

</mosaic_0001>

<llo_original>
// kernel: morse_loss.3
$region0: #{morse_loss.3}
  #allocation0 [shape = 'u32[]', space=smem, size = 0x4, offset = 0x4, fixed_abs, tag = 'smem constant byte address 0x4 - core index']
  #allocation1 [shape = 'u32[72,128]{1,0:T(1,128)}', space=vmem, size = 0x9000, scoped, tag = 'internal scratch']
  %s0 = inlined_call_operand.vmem [shape: f32[48,128], index: 0, kind: input, shape index: {}]
  %s1 = inlined_call_operand.vmem [shape: f32[3,48,128], index: 1, kind: input, shape index: {}]
  %s2 = inlined_call_operand.vmem [shape: f32[6,48,128], index: 2, kind: input, shape index: {}]
  %s3 = inlined_call_operand.vmem [shape: f32[1,4,48,128], index: 3, kind: output, shape index: {}]
  %s4 = sld [smem:[#allocation0]]
  $region26: #{morse_loss.3} parent=0
    _
  %s6 = ssub.s32 1, %s4
  %s7 = scalar_select 0, %s6, %s4
  // Predicated region
  $region2: #{morse_loss.3} parent=0 // pred_check
    _
  $region3: #{morse_loss.3} parent=0 // pred_check_branch
    %9 = sbr.rel (0) target = $region5
  $region4: #{morse_loss.3} parent=0 // pred_region
    %s10 = sadd.s32 0, 0
    %s11 = smul.u32 6, %s10
    %p12 = scmp.lt.s32.totalorder %s11, 5
    %s13 = scalar_select %p12, %s11, 5
    %s14 = smul.addr %s13, 8
    %s15 = scalar_lea.vmem %s0, %s14
    %s16 = sadd.s32 0, 0
    %s17 = smul.u32 6, %s16
  $region5: #{morse_loss.3} parent=0 // pred_fallthru
    _
  // Predicated region
  $region6: #{morse_loss.3} parent=0 // pred_check
    _
  $region7: #{morse_loss.3} parent=0 // pred_check_branch
    %19 = sbr.rel (0) target = $region9
  $region8: #{morse_loss.3} parent=0 // pred_region
    %s20 = sadd.s32 0, 0
    %s21 = smul.u32 6, %s20
    %p22 = scmp.lt.s32.totalorder %s21, 5
    %s23 = scalar_select %p22, %s21, 5
    %s24 = smul.addr %s23, 8
    %s25 = scalar_lea.vmem %s1, %s24
    %s26 = sadd.s32 0, 0
    %s27 = smul.u32 6, %s26
  $region9: #{morse_loss.3} parent=0 // pred_fallthru
    _
  // Predicated region
  $region10: #{morse_loss.3} parent=0 // pred_check
    _
  $region11: #{morse_loss.3} parent=0 // pred_check_branch
    %29 = sbr.rel (0) target = $region13
  $region12: #{morse_loss.3} parent=0 // pred_region
    %s30 = sadd.s32 0, 0
    %s31 = smul.u32 6, %s30
    %p32 = scmp.lt.s32.totalorder %s31, 5
    %s33 = scalar_select %p32, %s31, 5
    %s34 = smul.addr %s33, 8
    %s35 = scalar_lea.vmem %s2, %s34
    %s36 = sadd.s32 0, 0
    %s37 = smul.u32 6, %s36
  $region13: #{morse_loss.3} parent=0 // pred_fallthru
    _
  %s38 = sadd.s32 0, 0
  %s39 = smul.u32 6, %s38
  %p40 = scmp.lt.s32.totalorder %s39, 5
  %s41 = scalar_select %p40, %s39, 5
  %s42 = smul.addr %s41, 8
  %s43 = scalar_lea.vmem %s0, %s42
  %s44 = sadd.s32 0, 0
  %s45 = smul.u32 6, %s44
  %p46 = scmp.lt.s32.totalorder %s45, 5
  %s47 = scalar_select %p46, %s45, 5
  %s48 = smul.addr %s47, 8
  %s49 = scalar_lea.vmem %s1, %s48
  %s50 = sadd.s32 0, 0
  %s51 = smul.u32 6, %s50
  %p52 = scmp.lt.s32.totalorder %s51, 5
  %s53 = scalar_select %p52, %s51, 5
  %s54 = smul.addr %s53, 8
  %s55 = scalar_lea.vmem %s2, %s54
  %s56 = sadd.s32 0, 0
  %s57 = smul.u32 6, %s56
  %p58 = scmp.lt.s32.totalorder %s57, 5
  %s59 = scalar_select %p58, %s57, 5
  %s60 = smul.addr %s59, 8
  %s61 = scalar_lea.vmem %s0, %s60
  %s62 = sadd.s32 0, 0
  %s63 = smul.u32 6, %s62
  %s64 = sadd.s32 0, 0
  %s65 = smul.u32 6, %s64
  %p66 = scmp.lt.s32.totalorder %s65, 5
  %s67 = scalar_select %p66, %s65, 5
  %s68 = smul.addr %s67, 8
  %s69 = scalar_lea.vmem %s1, %s68
  %s70 = sadd.s32 0, 0
  %s71 = smul.u32 6, %s70
  %s72 = sadd.s32 0, 0
  %s73 = smul.u32 6, %s72
  %p74 = scmp.lt.s32.totalorder %s73, 5
  %s75 = scalar_select %p74, %s73, 5
  %s76 = smul.addr %s75, 8
  %s77 = scalar_lea.vmem %s2, %s76
  %s78 = sadd.s32 0, 0
  %s79 = smul.u32 6, %s78
  %p80 = scmp.eq.s32.totalorder 0, 0
  // Predicated region
  $region14: #{morse_loss.3} parent=0 // pred_check
    %p81 = pneg %p80
  $region15: #{morse_loss.3} parent=0 // pred_check_branch
    %83 = sbr.rel (%p81) target = $region17
  $region16: #{morse_loss.3} parent=0 // pred_region
    %84 = vst [vmem:[%s3] sm:$0xff] 0.0
    %85 = vst [vmem:[%s3 + $0x8] sm:$0xff] 0.0
    %86 = vst [vmem:[%s3 + $0x10] sm:$0xff] 0.0
    %87 = vst [vmem:[%s3 + $0x18] sm:$0xff] 0.0
    %88 = vst [vmem:[%s3 + $0x20] sm:$0xff] 0.0
    %89 = vst [vmem:[%s3 + $0x28] sm:$0xff] 0.0
    %90 = vst [vmem:[%s3 + $0x30] sm:$0xff] 0.0
    %91 = vst [vmem:[%s3 + $0x38] sm:$0xff] 0.0
    %92 = vst [vmem:[%s3 + $0x40] sm:$0xff] 0.0
    %93 = vst [vmem:[%s3 + $0x48] sm:$0xff] 0.0
    %94 = vst [vmem:[%s3 + $0x50] sm:$0xff] 0.0
    %95 = vst [vmem:[%s3 + $0x58] sm:$0xff] 0.0
    %96 = vst [vmem:[%s3 + $0x60] sm:$0xff] 0.0
    %97 = vst [vmem:[%s3 + $0x68] sm:$0xff] 0.0
    %98 = vst [vmem:[%s3 + $0x70] sm:$0xff] 0.0
    %99 = vst [vmem:[%s3 + $0x78] sm:$0xff] 0.0
    %100 = vst [vmem:[%s3 + $0x80] sm:$0xff] 0.0
    %101 = vst [vmem:[%s3 + $0x88] sm:$0xff] 0.0
    %102 = vst [vmem:[%s3 + $0x90] sm:$0xff] 0.0
    %103 = vst [vmem:[%s3 + $0x98] sm:$0xff] 0.0
    %104 = vst [vmem:[%s3 + $0xa0] sm:$0xff] 0.0
    %105 = vst [vmem:[%s3 + $0xa8] sm:$0xff] 0.0
    %106 = vst [vmem:[%s3 + $0xb0] sm:$0xff] 0.0
    %107 = vst [vmem:[%s3 + $0xb8] sm:$0xff] 0.0
  $region17: #{morse_loss.3} parent=0 // pred_fallthru
    _
  %v108 = vld [vmem:[%s61] sm:$0xff]
  %v109 = vld [vmem:[%s61 + $0x8] sm:$0xff]
  %v110 = vld [vmem:[%s61 + $0x10] sm:$0xff]
  %v111 = vld [vmem:[%s61 + $0x18] sm:$0xff]
  %v112 = vld [vmem:[%s61 + $0x20] sm:$0xff]
  %v113 = vld [vmem:[%s61 + $0x28] sm:$0xff]
  %v114 = vld [vmem:[%s69] sm:$0xff]
  %v115 = vld [vmem:[%s69 + $0x8] sm:$0xff]
  %v116 = vld [vmem:[%s69 + $0x10] sm:$0xff]
  %v117 = vld [vmem:[%s69 + $0x18] sm:$0xff]
  %v118 = vld [vmem:[%s69 + $0x20] sm:$0xff]
  %v119 = vld [vmem:[%s69 + $0x28] sm:$0xff]
  %s120 = scalar_lea.vmem %s69, 48
  %v121 = vld [vmem:[%s120] sm:$0xff]
  %v122 = vld [vmem:[%s120 + $0x8] sm:$0xff]
  %v123 = vld [vmem:[%s120 + $0x10] sm:$0xff]
  %v124 = vld [vmem:[%s120 + $0x18] sm:$0xff]
  %v125 = vld [vmem:[%s120 + $0x20] sm:$0xff]
  %v126 = vld [vmem:[%s120 + $0x28] sm:$0xff]
  %s127 = scalar_lea.vmem %s69, 96
  %v128 = vld [vmem:[%s127] sm:$0xff]
  %v129 = vld [vmem:[%s127 + $0x8] sm:$0xff]
  %v130 = vld [vmem:[%s127 + $0x10] sm:$0xff]
  %v131 = vld [vmem:[%s127 + $0x18] sm:$0xff]
  %v132 = vld [vmem:[%s127 + $0x20] sm:$0xff]
  %v133 = vld [vmem:[%s127 + $0x28] sm:$0xff]
  %v134 = vld [vmem:[%s77] sm:$0xff]
  %v135 = vld [vmem:[%s77 + $0x8] sm:$0xff]
  %v136 = vld [vmem:[%s77 + $0x10] sm:$0xff]
  %v137 = vld [vmem:[%s77 + $0x18] sm:$0xff]
  %v138 = vld [vmem:[%s77 + $0x20] sm:$0xff]
  %v139 = vld [vmem:[%s77 + $0x28] sm:$0xff]
  %s140 = scalar_lea.vmem %s77, 48
  %v141 = vld [vmem:[%s140] sm:$0xff]
  %v142 = vld [vmem:[%s140 + $0x8] sm:$0xff]
  %v143 = vld [vmem:[%s140 + $0x10] sm:$0xff]
  %v144 = vld [vmem:[%s140 + $0x18] sm:$0xff]
  %v145 = vld [vmem:[%s140 + $0x20] sm:$0xff]
  %v146 = vld [vmem:[%s140 + $0x28] sm:$0xff]
  %s147 = scalar_lea.vmem %s77, 96
  %v148 = vld [vmem:[%s147] sm:$0xff]
  %v149 = vld [vmem:[%s147 + $0x8] sm:$0xff]
  %v150 = vld [vmem:[%s147 + $0x10] sm:$0xff]
  %v151 = vld [vmem:[%s147 + $0x18] sm:$0xff]
  %v152 = vld [vmem:[%s147 + $0x20] sm:$0xff]
  %v153 = vld [vmem:[%s147 + $0x28] sm:$0xff]
  %s154 = scalar_lea.vmem %s77, 144
  %v155 = vld [vmem:[%s154] sm:$0xff]
  %v156 = vld [vmem:[%s154 + $0x8] sm:$0xff]
  %v157 = vld [vmem:[%s154 + $0x10] sm:$0xff]
  %v158 = vld [vmem:[%s154 + $0x18] sm:$0xff]
  %v159 = vld [vmem:[%s154 + $0x20] sm:$0xff]
  %v160 = vld [vmem:[%s154 + $0x28] sm:$0xff]
  %s161 = scalar_lea.vmem %s77, 192
  %v162 = vld [vmem:[%s161] sm:$0xff]
  %v163 = vld [vmem:[%s161 + $0x8] sm:$0xff]
  %v164 = vld [vmem:[%s161 + $0x10] sm:$0xff]
  %v165 = vld [vmem:[%s161 + $0x18] sm:$0xff]
  %v166 = vld [vmem:[%s161 + $0x20] sm:$0xff]
  %v167 = vld [vmem:[%s161 + $0x28] sm:$0xff]
  %s168 = scalar_lea.vmem %s77, 240
  %v169 = vld [vmem:[%s168] sm:$0xff]
  %v170 = vld [vmem:[%s168 + $0x8] sm:$0xff]
  %v171 = vld [vmem:[%s168 + $0x10] sm:$0xff]
  %v172 = vld [vmem:[%s168 + $0x18] sm:$0xff]
  %v173 = vld [vmem:[%s168 + $0x20] sm:$0xff]
  %v174 = vld [vmem:[%s168 + $0x28] sm:$0xff]
  %v175 = vand.u32 2147483647, %v108
  %v176 = vand.u32 2147483647, %v109
  %v177 = vand.u32 2147483647, %v110
  %v178 = vand.u32 2147483647, %v111
  %v179 = vand.u32 2147483647, %v112
  %v180 = vand.u32 2147483647, %v113
  %v181 = vmul.f32 %v114, %v114
  %v182 = vmul.f32 %v115, %v115
  %v183 = vmul.f32 %v116, %v116
  %v184 = vmul.f32 %v117, %v117
  %v185 = vmul.f32 %v118, %v118
  %v186 = vmul.f32 %v119, %v119
  %v187 = vmul.f32 %v121, %v121
  %v188 = vmul.f32 %v122, %v122
  %v189 = vmul.f32 %v123, %v123
  %v190 = vmul.f32 %v124, %v124
  %v191 = vmul.f32 %v125, %v125
  %v192 = vmul.f32 %v126, %v126
  %v193 = vmul.f32 %v128, %v128
  %v194 = vmul.f32 %v129, %v129
  %v195 = vmul.f32 %v130, %v130
  %v196 = vmul.f32 %v131, %v131
  %v197 = vmul.f32 %v132, %v132
  %v198 = vmul.f32 %v133, %v133
  %v199 = vadd.f32 %v181, %v187
  %v200 = vadd.f32 %v182, %v188
  %v201 = vadd.f32 %v183, %v189
  %v202 = vadd.f32 %v184, %v190
  %v203 = vadd.f32 %v185, %v191
  %v204 = vadd.f32 %v186, %v192
  %v205 = vadd.f32 %v199, %v193
  %v206 = vadd.f32 %v200, %v194
  %v207 = vadd.f32 %v201, %v195
  %v208 = vadd.f32 %v202, %v196
  %v209 = vadd.f32 %v203, %v197
  %v210 = vadd.f32 %v204, %v198
  %v211 = vmul.f32 %v155, %v169
  %v212 = vmul.f32 %v156, %v170
  %v213 = vmul.f32 %v157, %v171
  %v214 = vmul.f32 %v158, %v172
  %v215 = vmul.f32 %v159, %v173
  %v216 = vmul.f32 %v160, %v174
  %v217 = vmul.f32 %v162, %v162
  %v218 = vmul.f32 %v163, %v163
  %v219 = vmul.f32 %v164, %v164
  %v220 = vmul.f32 %v165, %v165
  %v221 = vmul.f32 %v166, %v166
  %v222 = vmul.f32 %v167, %v167
  %v223 = vsub.f32 %v211, %v217
  %v224 = vsub.f32 %v212, %v218
  %v225 = vsub.f32 %v213, %v219
  %v226 = vsub.f32 %v214, %v220
  %v227 = vsub.f32 %v215, %v221
  %v228 = vsub.f32 %v216, %v222
  %v229 = vmul.f32 %v134, %v169
  %v230 = vmul.f32 %v135, %v170
  %v231 = vmul.f32 %v136, %v171
  %v232 = vmul.f32 %v137, %v172
  %v233 = vmul.f32 %v138, %v173
  %v234 = vmul.f32 %v139, %v174
  %v235 = vmul.f32 %v148, %v148
  %v236 = vmul.f32 %v149, %v149
  %v237 = vmul.f32 %v150, %v150
  %v238 = vmul.f32 %v151, %v151
  %v239 = vmul.f32 %v152, %v152
  %v240 = vmul.f32 %v153, %v153
  %v241 = vsub.f32 %v229, %v235
  %v242 = vsub.f32 %v230, %v236
  %v243 = vsub.f32 %v231, %v237
  %v244 = vsub.f32 %v232, %v238
  %v245 = vsub.f32 %v233, %v239
  %v246 = vsub.f32 %v234, %v240
  %v247 = vmul.f32 %v134, %v155
  %v248 = vmul.f32 %v135, %v156
  %v249 = vmul.f32 %v136, %v157
  %v250 = vmul.f32 %v137, %v158
  %v251 = vmul.f32 %v138, %v159
  %v252 = vmul.f32 %v139, %v160
  %v253 = vmul.f32 %v141, %v141
  %v254 = vmul.f32 %v142, %v142
  %v255 = vmul.f32 %v143, %v143
  %v256 = vmul.f32 %v144, %v144
  %v257 = vmul.f32 %v145, %v145
  %v258 = vmul.f32 %v146, %v146
  %v259 = vsub.f32 %v247, %v253
  %v260 = vsub.f32 %v248, %v254
  %v261 = vsub.f32 %v249, %v255
  %v262 = vsub.f32 %v250, %v256
  %v263 = vsub.f32 %v251, %v257
  %v264 = vsub.f32 %v252, %v258
  %v265 = vmul.f32 %v148, %v162
  %v266 = vmul.f32 %v149, %v163
  %v267 = vmul.f32 %v150, %v164
  %v268 = vmul.f32 %v151, %v165
  %v269 = vmul.f32 %v152, %v166
  %v270 = vmul.f32 %v153, %v167
  %v271 = vmul.f32 %v141, %v169
  %v272 = vmul.f32 %v142, %v170
  %v273 = vmul.f32 %v143, %v171
  %v274 = vmul.f32 %v144, %v172
  %v275 = vmul.f32 %v145, %v173
  %v276 = vmul.f32 %v146, %v174
  %v277 = vsub.f32 %v265, %v271
  %v278 = vsub.f32 %v266, %v272
  %v279 = vsub.f32 %v267, %v273
  %v280 = vsub.f32 %v268, %v274
  %v281 = vsub.f32 %v269, %v275
  %v282 = vsub.f32 %v270, %v276
  %v283 = vmul.f32 %v141, %v162
  %v284 = vmul.f32 %v142, %v163
  %v285 = vmul.f32 %v143, %v164
  %v286 = vmul.f32 %v144, %v165
  %v287 = vmul.f32 %v145, %v166
  %v288 = vmul.f32 %v146, %v167
  %v289 = vmul.f32 %v148, %v155
  %v290 = vmul.f32 %v149, %v156
  %v291 = vmul.f32 %v150, %v157
  %v292 = vmul.f32 %v151, %v158
  %v293 = vmul.f32 %v152, %v159
  %v294 = vmul.f32 %v153, %v160
  %v295 = vsub.f32 %v283, %v289
  %v296 = vsub.f32 %v284, %v290
  %v297 = vsub.f32 %v285, %v291
  %v298 = vsub.f32 %v286, %v292
  %v299 = vsub.f32 %v287, %v293
  %v300 = vsub.f32 %v288, %v294
  %v301 = vmul.f32 %v141, %v148
  %v302 = vmul.f32 %v142, %v149
  %v303 = vmul.f32 %v143, %v150
  %v304 = vmul.f32 %v144, %v151
  %v305 = vmul.f32 %v145, %v152
  %v306 = vmul.f32 %v146, %v153
  %v307 = vmul.f32 %v134, %v162
  %v308 = vmul.f32 %v135, %v163
  %v309 = vmul.f32 %v136, %v164
  %v310 = vmul.f32 %v137, %v165
  %v311 = vmul.f32 %v138, %v166
  %v312 = vmul.f32 %v139, %v167
  %v313 = vsub.f32 %v301, %v307
  %v314 = vsub.f32 %v302, %v308
  %v315 = vsub.f32 %v303, %v309
  %v316 = vsub.f32 %v304, %v310
  %v317 = vsub.f32 %v305, %v311
  %v318 = vsub.f32 %v306, %v312
  %v319 = vmul.f32 %v181, %v223
  %v320 = vmul.f32 %v182, %v224
  %v321 = vmul.f32 %v183, %v225
  %v322 = vmul.f32 %v184, %v226
  %v323 = vmul.f32 %v185, %v227
  %v324 = vmul.f32 %v186, %v228
  %v325 = vmul.f32 %v187, %v241
  %v326 = vmul.f32 %v188, %v242
  %v327 = vmul.f32 %v189, %v243
  %v328 = vmul.f32 %v190, %v244
  %v329 = vmul.f32 %v191, %v245
  %v330 = vmul.f32 %v192, %v246
  %v331 = vadd.f32 %v319, %v325
  %v332 = vadd.f32 %v320, %v326
  %v333 = vadd.f32 %v321, %v327
  %v334 = vadd.f32 %v322, %v328
  %v335 = vadd.f32 %v323, %v329
  %v336 = vadd.f32 %v324, %v330
  %v337 = vmul.f32 %v193, %v259
  %v338 = vmul.f32 %v194, %v260
  %v339 = vmul.f32 %v195, %v261
  %v340 = vmul.f32 %v196, %v262
  %v341 = vmul.f32 %v197, %v263
  %v342 = vmul.f32 %v198, %v264
  %v343 = vadd.f32 %v331, %v337
  %v344 = vadd.f32 %v332, %v338
  %v345 = vadd.f32 %v333, %v339
  %v346 = vadd.f32 %v334, %v340
  %v347 = vadd.f32 %v335, %v341
  %v348 = vadd.f32 %v336, %v342
  %v349 = vmul.f32 %v114, %v121
  %v350 = vmul.f32 %v115, %v122
  %v351 = vmul.f32 %v116, %v123
  %v352 = vmul.f32 %v117, %v124
  %v353 = vmul.f32 %v118, %v125
  %v354 = vmul.f32 %v119, %v126
  %v355 = vmul.f32 %v349, %v277
  %v356 = vmul.f32 %v350, %v278
  %v357 = vmul.f32 %v351, %v279
  %v358 = vmul.f32 %v352, %v280
  %v359 = vmul.f32 %v353, %v281
  %v360 = vmul.f32 %v354, %v282
  %v361 = vmul.f32 %v114, %v128
  %v362 = vmul.f32 %v115, %v129
  %v363 = vmul.f32 %v116, %v130
  %v364 = vmul.f32 %v117, %v131
  %v365 = vmul.f32 %v118, %v132
  %v366 = vmul.f32 %v119, %v133
  %v367 = vmul.f32 %v361, %v295
  %v368 = vmul.f32 %v362, %v296
  %v369 = vmul.f32 %v363, %v297
  %v370 = vmul.f32 %v364, %v298
  %v371 = vmul.f32 %v365, %v299
  %v372 = vmul.f32 %v366, %v300
  %v373 = vadd.f32 %v355, %v367
  %v374 = vadd.f32 %v356, %v368
  %v375 = vadd.f32 %v357, %v369
  %v376 = vadd.f32 %v358, %v370
  %v377 = vadd.f32 %v359, %v371
  %v378 = vadd.f32 %v360, %v372
  %v379 = vmul.f32 %v121, %v128
  %v380 = vmul.f32 %v122, %v129
  %v381 = vmul.f32 %v123, %v130
  %v382 = vmul.f32 %v124, %v131
  %v383 = vmul.f32 %v125, %v132
  %v384 = vmul.f32 %v126, %v133
  %v385 = vmul.f32 %v379, %v313
  %v386 = vmul.f32 %v380, %v314
  %v387 = vmul.f32 %v381, %v315
  %v388 = vmul.f32 %v382, %v316
  %v389 = vmul.f32 %v383, %v317
  %v390 = vmul.f32 %v384, %v318
  %v391 = vadd.f32 %v373, %v385
  %v392 = vadd.f32 %v374, %v386
  %v393 = vadd.f32 %v375, %v387
  %v394 = vadd.f32 %v376, %v388
  %v395 = vadd.f32 %v377, %v389
  %v396 = vadd.f32 %v378, %v390
  %v397 = vmul.f32 %v391, 2.0
  %v398 = vmul.f32 %v392, 2.0
  %v399 = vmul.f32 %v393, 2.0
  %v400 = vmul.f32 %v394, 2.0
  %v401 = vmul.f32 %v395, 2.0
  %v402 = vmul.f32 %v396, 2.0
  %v403 = vadd.f32 %v343, %v397
  %v404 = vadd.f32 %v344, %v398
  %v405 = vadd.f32 %v345, %v399
  %v406 = vadd.f32 %v346, %v400
  %v407 = vadd.f32 %v347, %v401
  %v408 = vadd.f32 %v348, %v402
  %v409 = vsub.f32 0.0, %v403
  %v410 = vsub.f32 0.0, %v404
  %v411 = vsub.f32 0.0, %v405
  %v412 = vsub.f32 0.0, %v406
  %v413 = vsub.f32 0.0, %v407
  %v414 = vsub.f32 0.0, %v408
  %v415 = vadd.f32 %v205, 1e-12
  %v416 = vadd.f32 %v206, 1e-12
  %v417 = vadd.f32 %v207, 1e-12
  %v418 = vadd.f32 %v208, 1e-12
  %v419 = vadd.f32 %v209, 1e-12
  %v420 = vadd.f32 %v210, 1e-12
  %v421 = vrcp.pop %v415
  %v422 = vrcp.pop %v416
  %v423 = vrcp.pop %v417
  %v424 = vrcp.pop %v418
  %v425 = vrcp.pop %v419
  %v426 = vrcp.pop %v420
  %v427 = vmul.f32 %v415, %v421
  %v428 = vmul.f32 %v416, %v422
  %v429 = vmul.f32 %v417, %v423
  %v430 = vmul.f32 %v418, %v424
  %v431 = vmul.f32 %v419, %v425
  %v432 = vmul.f32 %v420, %v426
  %v433 = vsub.f32 2.0, %v427
  %v434 = vsub.f32 2.0, %v428
  %v435 = vsub.f32 2.0, %v429
  %v436 = vsub.f32 2.0, %v430
  %v437 = vsub.f32 2.0, %v431
  %v438 = vsub.f32 2.0, %v432
  %v439 = vmul.f32 %v421, %v433
  %v440 = vmul.f32 %v422, %v434
  %v441 = vmul.f32 %v423, %v435
  %v442 = vmul.f32 %v424, %v436
  %v443 = vmul.f32 %v425, %v437
  %v444 = vmul.f32 %v426, %v438
  %v445 = vmul.f32 %v415, %v439
  %v446 = vmul.f32 %v416, %v440
  %v447 = vmul.f32 %v417, %v441
  %v448 = vmul.f32 %v418, %v442
  %v449 = vmul.f32 %v419, %v443
  %v450 = vmul.f32 %v420, %v444
  %v451 = vsub.f32 2.0, %v445
  %v452 = vsub.f32 2.0, %v446
  %v453 = vsub.f32 2.0, %v447
  %v454 = vsub.f32 2.0, %v448
  %v455 = vsub.f32 2.0, %v449
  %v456 = vsub.f32 2.0, %v450
  %v457 = vmul.f32 %v439, %v451
  %v458 = vmul.f32 %v440, %v452
  %v459 = vmul.f32 %v441, %v453
  %v460 = vmul.f32 %v442, %v454
  %v461 = vmul.f32 %v443, %v455
  %v462 = vmul.f32 %v444, %v456
  %v463 = vld [vmem:[%s3] sm:$0xff]
  %v464 = vld [vmem:[%s3 + $0x8] sm:$0xff]
  %v465 = vld [vmem:[%s3 + $0x10] sm:$0xff]
  %v466 = vld [vmem:[%s3 + $0x18] sm:$0xff]
  %v467 = vld [vmem:[%s3 + $0x20] sm:$0xff]
  %v468 = vld [vmem:[%s3 + $0x28] sm:$0xff]
  %v469 = vadd.f32 %v463, %v175
  %v470 = vadd.f32 %v464, %v176
  %v471 = vadd.f32 %v465, %v177
  %v472 = vadd.f32 %v466, %v178
  %v473 = vadd.f32 %v467, %v179
  %v474 = vadd.f32 %v468, %v180
  %475 = vst [vmem:[%s3] sm:$0xff] %v469
  %476 = vst [vmem:[%s3 + $0x8] sm:$0xff] %v470
  %477 = vst [vmem:[%s3 + $0x10] sm:$0xff] %v471
  %478 = vst [vmem:[%s3 + $0x18] sm:$0xff] %v472
  %479 = vst [vmem:[%s3 + $0x20] sm:$0xff] %v473
  %480 = vst [vmem:[%s3 + $0x28] sm:$0xff] %v474
  %s481 = scalar_lea.vmem %s3, 48
  %v482 = vld [vmem:[%s481] sm:$0xff]
  %v483 = vld [vmem:[%s481 + $0x8] sm:$0xff]
  %v484 = vld [vmem:[%s481 + $0x10] sm:$0xff]
  %v485 = vld [vmem:[%s481 + $0x18] sm:$0xff]
  %v486 = vld [vmem:[%s481 + $0x20] sm:$0xff]
  %v487 = vld [vmem:[%s481 + $0x28] sm:$0xff]
  %v488 = vmul.f32 %v175, -100.0
  %v489 = vmul.f32 %v176, -100.0
  %v490 = vmul.f32 %v177, -100.0
  %v491 = vmul.f32 %v178, -100.0
  %v492 = vmul.f32 %v179, -100.0
  %v493 = vmul.f32 %v180, -100.0
  %v494 = vmul.f32 %v488, 1.442695
  %v495 = vpow.pop %v494
  %v496 = vmul.f32 %v489, 1.442695
  %v497 = vpow.pop %v496
  %v498 = vmul.f32 %v490, 1.442695
  %v499 = vpow.pop %v498
  %v500 = vmul.f32 %v491, 1.442695
  %v501 = vpow.pop %v500
  %v502 = vmul.f32 %v492, 1.442695
  %v503 = vpow.pop %v502
  %v504 = vmul.f32 %v493, 1.442695
  %v505 = vpow.pop %v504
  %v506 = vadd.f32 %v482, %v495
  %v507 = vadd.f32 %v483, %v497
  %v508 = vadd.f32 %v484, %v499
  %v509 = vadd.f32 %v485, %v501
  %v510 = vadd.f32 %v486, %v503
  %v511 = vadd.f32 %v487, %v505
  %512 = vst [vmem:[%s481] sm:$0xff] %v506
  %513 = vst [vmem:[%s481 + $0x8] sm:$0xff] %v507
  %514 = vst [vmem:[%s481 + $0x10] sm:$0xff] %v508
  %515 = vst [vmem:[%s481 + $0x18] sm:$0xff] %v509
  %516 = vst [vmem:[%s481 + $0x20] sm:$0xff] %v510
  %517 = vst [vmem:[%s481 + $0x28] sm:$0xff] %v511
  %s518 = scalar_lea.vmem %s3, 96
  %v519 = vld [vmem:[%s518] sm:$0xff]
  %v520 = vld [vmem:[%s518 + $0x8] sm:$0xff]
  %v521 = vld [vmem:[%s518 + $0x10] sm:$0xff]
  %v522 = vld [vmem:[%s518 + $0x18] sm:$0xff]
  %v523 = vld [vmem:[%s518 + $0x20] sm:$0xff]
  %v524 = vld [vmem:[%s518 + $0x28] sm:$0xff]
  %v525 = vrsqrt.pop %v205
  %v526 = vmul.f32 %v525, %v205
  %v527 = vmul.f32 %v526, %v525
  %v528 = vmul.f32 0.5, %v527
  %v529 = vsub.f32 1.5, %v528
  %v530 = vmul.f32 %v525, %v529
  %v531 = vmul.f32 %v205, %v530
  %vm532 = vcmp.eq.f32.partialorder %v205, inf
  %v533 = vsel %vm532, %v205, %v531
  %vm534 = vcmp.eq.f32.partialorder %v205, 0.0
  %v535 = vand.u32 %v205, 2147483648
  %v536 = vsel %vm534, %v535, %v533
  %v537 = vrsqrt.pop %v206
  %v538 = vmul.f32 %v537, %v206
  %v539 = vmul.f32 %v538, %v537
  %v540 = vmul.f32 0.5, %v539
  %v541 = vsub.f32 1.5, %v540
  %v542 = vmul.f32 %v537, %v541
  %v543 = vmul.f32 %v206, %v542
  %vm544 = vcmp.eq.f32.partialorder %v206, inf
  %v545 = vsel %vm544, %v206, %v543
  %vm546 = vcmp.eq.f32.partialorder %v206, 0.0
  %v547 = vand.u32 %v206, 2147483648
  %v548 = vsel %vm546, %v547, %v545
  %v549 = vrsqrt.pop %v207
  %v550 = vmul.f32 %v549, %v207
  %v551 = vmul.f32 %v550, %v549
  %v552 = vmul.f32 0.5, %v551
  %v553 = vsub.f32 1.5, %v552
  %v554 = vmul.f32 %v549, %v553
  %v555 = vmul.f32 %v207, %v554
  %vm556 = vcmp.eq.f32.partialorder %v207, inf
  %v557 = vsel %vm556, %v207, %v555
  %vm558 = vcmp.eq.f32.partialorder %v207, 0.0
  %v559 = vand.u32 %v207, 2147483648
  %v560 = vsel %vm558, %v559, %v557
  %v561 = vrsqrt.pop %v208
  %v562 = vmul.f32 %v561, %v208
  %v563 = vmul.f32 %v562, %v561
  %v564 = vmul.f32 0.5, %v563
  %v565 = vsub.f32 1.5, %v564
  %v566 = vmul.f32 %v561, %v565
  %v567 = vmul.f32 %v208, %v566
  %vm568 = vcmp.eq.f32.partialorder %v208, inf
  %v569 = vsel %vm568, %v208, %v567
  %vm570 = vcmp.eq.f32.partialorder %v208, 0.0
  %v571 = vand.u32 %v208, 2147483648
  %v572 = vsel %vm570, %v571, %v569
  %v573 = vrsqrt.pop %v209
  %v574 = vmul.f32 %v573, %v209
  %v575 = vmul.f32 %v574, %v573
  %v576 = vmul.f32 0.5, %v575
  %v577 = vsub.f32 1.5, %v576
  %v578 = vmul.f32 %v573, %v577
  %v579 = vmul.f32 %v209, %v578
  %vm580 = vcmp.eq.f32.partialorder %v209, inf
  %v581 = vsel %vm580, %v209, %v579
  %vm582 = vcmp.eq.f32.partialorder %v209, 0.0
  %v583 = vand.u32 %v209, 2147483648
  %v584 = vsel %vm582, %v583, %v581
  %v585 = vrsqrt.pop %v210
  %v586 = vmul.f32 %v585, %v210
  %v587 = vmul.f32 %v586, %v585
  %v588 = vmul.f32 0.5, %v587
  %v589 = vsub.f32 1.5, %v588
  %v590 = vmul.f32 %v585, %v589
  %v591 = vmul.f32 %v210, %v590
  %vm592 = vcmp.eq.f32.partialorder %v210, inf
  %v593 = vsel %vm592, %v210, %v591
  %vm594 = vcmp.eq.f32.partialorder %v210, 0.0
  %v595 = vand.u32 %v210, 2147483648
  %v596 = vsel %vm594, %v595, %v593
  %v597 = vsub.f32 %v536, 1.0
  %v598 = vsub.f32 %v548, 1.0
  %v599 = vsub.f32 %v560, 1.0
  %v600 = vsub.f32 %v572, 1.0
  %v601 = vsub.f32 %v584, 1.0
  %v602 = vsub.f32 %v596, 1.0
  %v603 = vand.u32 2147483647, %v597
  %v604 = vand.u32 2147483647, %v598
  %v605 = vand.u32 2147483647, %v599
  %v606 = vand.u32 2147483647, %v600
  %v607 = vand.u32 2147483647, %v601
  %v608 = vand.u32 2147483647, %v602
  %v609 = vadd.f32 %v519, %v603
  %v610 = vadd.f32 %v520, %v604
  %v611 = vadd.f32 %v521, %v605
  %v612 = vadd.f32 %v522, %v606
  %v613 = vadd.f32 %v523, %v607
  %v614 = vadd.f32 %v524, %v608
  %615 = vst [vmem:[%s518] sm:$0xff] %v609
  %616 = vst [vmem:[%s518 + $0x8] sm:$0xff] %v610
  %617 = vst [vmem:[%s518 + $0x10] sm:$0xff] %v611
  %618 = vst [vmem:[%s518 + $0x18] sm:$0xff] %v612
  %619 = vst [vmem:[%s518 + $0x20] sm:$0xff] %v613
  %620 = vst [vmem:[%s518 + $0x28] sm:$0xff] %v614
  %s621 = scalar_lea.vmem %s3, 144
  %v622 = vld [vmem:[%s621] sm:$0xff]
  %v623 = vld [vmem:[%s621 + $0x8] sm:$0xff]
  %v624 = vld [vmem:[%s621 + $0x10] sm:$0xff]
  %v625 = vld [vmem:[%s621 + $0x18] sm:$0xff]
  %v626 = vld [vmem:[%s621 + $0x20] sm:$0xff]
  %v627 = vld [vmem:[%s621 + $0x28] sm:$0xff]
  %v628 = vmul.f32 %v409, %v457
  %v629 = vmul.f32 %v410, %v458
  %v630 = vmul.f32 %v411, %v459
  %v631 = vmul.f32 %v412, %v460
  %v632 = vmul.f32 %v413, %v461
  %v633 = vmul.f32 %v414, %v462
  %v634 = vand.u32 2147483647, %v628
  %v635 = vand.u32 2147483647, %v629
  %v636 = vand.u32 2147483647, %v630
  %v637 = vand.u32 2147483647, %v631
  %v638 = vand.u32 2147483647, %v632
  %v639 = vand.u32 2147483647, %v633
  %v640 = vadd.f32 %v622, %v634
  %v641 = vadd.f32 %v623, %v635
  %v642 = vadd.f32 %v624, %v636
  %v643 = vadd.f32 %v625, %v637
  %v644 = vadd.f32 %v626, %v638
  %v645 = vadd.f32 %v627, %v639
  %646 = vst [vmem:[%s621] sm:$0xff] %v640
  %647 = vst [vmem:[%s621 + $0x8] sm:$0xff] %v641
  %648 = vst [vmem:[%s621 + $0x10] sm:$0xff] %v642
  %649 = vst [vmem:[%s621 + $0x18] sm:$0xff] %v643
  %650 = vst [vmem:[%s621 + $0x20] sm:$0xff] %v644
  %651 = vst [vmem:[%s621 + $0x28] sm:$0xff] %v645
  // Predicated region
  $region18: #{morse_loss.3} parent=0 // pred_check
    _
  $region19: #{morse_loss.3} parent=0 // pred_check_branch
    %653 = sbr.rel (0) target = $region21
  $region20: #{morse_loss.3} parent=0 // pred_region
    _
  $region21: #{morse_loss.3} parent=0 // pred_fallthru
    _
  // Predicated region
  $region22: #{morse_loss.3} parent=0 // pred_check
    _
  $region23: #{morse_loss.3} parent=0 // pred_check_branch
    %655 = sbr.rel (0) target = $region25
  $region24: #{morse_loss.3} parent=0 // pred_region
    _
  $region25: #{morse_loss.3} parent=0 // pred_fallthru
    _

// kernel: morse_loss.2
$region0: #{morse_loss.2}
  #allocation0 [shape = 'u32[]', space=smem, size = 0x4, offset = 0x4, fixed_abs, tag = 'smem constant byte address 0x4 - core index']
  #allocation1 [shape = 'u32[72,128]{1,0:T(1,128)}', space=vmem, size = 0x9000, scoped, tag = 'internal scratch']
  %s0 = inlined_call_operand.vmem [shape: f32[64,128], index: 0, kind: input, shape index: {}]
  %s1 = inlined_call_operand.vmem [shape: f32[3,64,128], index: 1, kind: input, shape index: {}]
  %s2 = inlined_call_operand.vmem [shape: f32[6,64,128], index: 2, kind: input, shape index: {}]
  %s3 = inlined_call_operand.vmem [shape: f32[1,4,64,128], index: 3, kind: output, shape index: {}]
  %s4 = sld [smem:[#allocation0]]
  $region26: #{morse_loss.2} parent=0
    _
  %s6 = ssub.s32 1, %s4
  %s7 = scalar_select 0, %s6, %s4
  // Predicated region
  $region2: #{morse_loss.2} parent=0 // pred_check
    _
  $region3: #{morse_loss.2} parent=0 // pred_check_branch
    %9 = sbr.rel (0) target = $region5
  $region4: #{morse_loss.2} parent=0 // pred_region
    %s10 = sadd.s32 0, 0
    %s11 = smul.u32 8, %s10
    %p12 = scmp.lt.s32.totalorder %s11, 7
    %s13 = scalar_select %p12, %s11, 7
    %s14 = smul.addr %s13, 8
    %s15 = scalar_lea.vmem %s0, %s14
    %s16 = sadd.s32 0, 0
    %s17 = smul.u32 8, %s16
  $region5: #{morse_loss.2} parent=0 // pred_fallthru
    _
  // Predicated region
  $region6: #{morse_loss.2} parent=0 // pred_check
    _
  $region7: #{morse_loss.2} parent=0 // pred_check_branch
    %19 = sbr.rel (0) target = $region9
  $region8: #{morse_loss.2} parent=0 // pred_region
    %s20 = sadd.s32 0, 0
    %s21 = smul.u32 8, %s20
    %p22 = scmp.lt.s32.totalorder %s21, 7
    %s23 = scalar_select %p22, %s21, 7
    %s24 = smul.addr %s23, 8
    %s25 = scalar_lea.vmem %s1, %s24
    %s26 = sadd.s32 0, 0
    %s27 = smul.u32 8, %s26
  $region9: #{morse_loss.2} parent=0 // pred_fallthru
    _
  // Predicated region
  $region10: #{morse_loss.2} parent=0 // pred_check
    _
  $region11: #{morse_loss.2} parent=0 // pred_check_branch
    %29 = sbr.rel (0) target = $region13
  $region12: #{morse_loss.2} parent=0 // pred_region
    %s30 = sadd.s32 0, 0
    %s31 = smul.u32 8, %s30
    %p32 = scmp.lt.s32.totalorder %s31, 7
    %s33 = scalar_select %p32, %s31, 7
    %s34 = smul.addr %s33, 8
    %s35 = scalar_lea.vmem %s2, %s34
    %s36 = sadd.s32 0, 0
    %s37 = smul.u32 8, %s36
  $region13: #{morse_loss.2} parent=0 // pred_fallthru
    _
  %s38 = sadd.s32 0, 0
  %s39 = smul.u32 8, %s38
  %p40 = scmp.lt.s32.totalorder %s39, 7
  %s41 = scalar_select %p40, %s39, 7
  %s42 = smul.addr %s41, 8
  %s43 = scalar_lea.vmem %s0, %s42
  %s44 = sadd.s32 0, 0
  %s45 = smul.u32 8, %s44
  %p46 = scmp.lt.s32.totalorder %s45, 7
  %s47 = scalar_select %p46, %s45, 7
  %s48 = smul.addr %s47, 8
  %s49 = scalar_lea.vmem %s1, %s48
  %s50 = sadd.s32 0, 0
  %s51 = smul.u32 8, %s50
  %p52 = scmp.lt.s32.totalorder %s51, 7
  %s53 = scalar_select %p52, %s51, 7
  %s54 = smul.addr %s53, 8
  %s55 = scalar_lea.vmem %s2, %s54
  %s56 = sadd.s32 0, 0
  %s57 = smul.u32 8, %s56
  %p58 = scmp.lt.s32.totalorder %s57, 7
  %s59 = scalar_select %p58, %s57, 7
  %s60 = smul.addr %s59, 8
  %s61 = scalar_lea.vmem %s0, %s60
  %s62 = sadd.s32 0, 0
  %s63 = smul.u32 8, %s62
  %s64 = sadd.s32 0, 0
  %s65 = smul.u32 8, %s64
  %p66 = scmp.lt.s32.totalorder %s65, 7
  %s67 = scalar_select %p66, %s65, 7
  %s68 = smul.addr %s67, 8
  %s69 = scalar_lea.vmem %s1, %s68
  %s70 = sadd.s32 0, 0
  %s71 = smul.u32 8, %s70
  %s72 = sadd.s32 0, 0
  %s73 = smul.u32 8, %s72
  %p74 = scmp.lt.s32.totalorder %s73, 7
  %s75 = scalar_select %p74, %s73, 7
  %s76 = smul.addr %s75, 8
  %s77 = scalar_lea.vmem %s2, %s76
  %s78 = sadd.s32 0, 0
  %s79 = smul.u32 8, %s78
  %p80 = scmp.eq.s32.totalorder 0, 0
  // Predicated region
  $region14: #{morse_loss.2} parent=0 // pred_check
    %p81 = pneg %p80
  $region15: #{morse_loss.2} parent=0 // pred_check_branch
    %83 = sbr.rel (%p81) target = $region17
  $region16: #{morse_loss.2} parent=0 // pred_region
    %84 = vst [vmem:[%s3] sm:$0xff] 0.0
    %85 = vst [vmem:[%s3 + $0x8] sm:$0xff] 0.0
    %86 = vst [vmem:[%s3 + $0x10] sm:$0xff] 0.0
    %87 = vst [vmem:[%s3 + $0x18] sm:$0xff] 0.0
    %88 = vst [vmem:[%s3 + $0x20] sm:$0xff] 0.0
    %89 = vst [vmem:[%s3 + $0x28] sm:$0xff] 0.0
    %90 = vst [vmem:[%s3 + $0x30] sm:$0xff] 0.0
    %91 = vst [vmem:[%s3 + $0x38] sm:$0xff] 0.0
    %92 = vst [vmem:[%s3 + $0x40] sm:$0xff] 0.0
    %93 = vst [vmem:[%s3 + $0x48] sm:$0xff] 0.0
    %94 = vst [vmem:[%s3 + $0x50] sm:$0xff] 0.0
    %95 = vst [vmem:[%s3 + $0x58] sm:$0xff] 0.0
    %96 = vst [vmem:[%s3 + $0x60] sm:$0xff] 0.0
    %97 = vst [vmem:[%s3 + $0x68] sm:$0xff] 0.0
    %98 = vst [vmem:[%s3 + $0x70] sm:$0xff] 0.0
    %99 = vst [vmem:[%s3 + $0x78] sm:$0xff] 0.0
    %100 = vst [vmem:[%s3 + $0x80] sm:$0xff] 0.0
    %101 = vst [vmem:[%s3 + $0x88] sm:$0xff] 0.0
    %102 = vst [vmem:[%s3 + $0x90] sm:$0xff] 0.0
    %103 = vst [vmem:[%s3 + $0x98] sm:$0xff] 0.0
    %104 = vst [vmem:[%s3 + $0xa0] sm:$0xff] 0.0
    %105 = vst [vmem:[%s3 + $0xa8] sm:$0xff] 0.0
    %106 = vst [vmem:[%s3 + $0xb0] sm:$0xff] 0.0
    %107 = vst [vmem:[%s3 + $0xb8] sm:$0xff] 0.0
    %108 = vst [vmem:[%s3 + $0xc0] sm:$0xff] 0.0
    %109 = vst [vmem:[%s3 + $0xc8] sm:$0xff] 0.0
    %110 = vst [vmem:[%s3 + $0xd0] sm:$0xff] 0.0
    %111 = vst [vmem:[%s3 + $0xd8] sm:$0xff] 0.0
    %112 = vst [vmem:[%s3 + $0xe0] sm:$0xff] 0.0
    %113 = vst [vmem:[%s3 + $0xe8] sm:$0xff] 0.0
    %114 = vst [vmem:[%s3 + $0xf0] sm:$0xff] 0.0
    %115 = vst [vmem:[%s3 + $0xf8] sm:$0xff] 0.0
  $region17: #{morse_loss.2} parent=0 // pred_fallthru
    _
  %v116 = vld [vmem:[%s61] sm:$0xff]
  %v117 = vld [vmem:[%s61 + $0x8] sm:$0xff]
  %v118 = vld [vmem:[%s61 + $0x10] sm:$0xff]
  %v119 = vld [vmem:[%s61 + $0x18] sm:$0xff]
  %v120 = vld [vmem:[%s61 + $0x20] sm:$0xff]
  %v121 = vld [vmem:[%s61 + $0x28] sm:$0xff]
  %v122 = vld [vmem:[%s61 + $0x30] sm:$0xff]
  %v123 = vld [vmem:[%s61 + $0x38] sm:$0xff]
  %v124 = vld [vmem:[%s69] sm:$0xff]
  %v125 = vld [vmem:[%s69 + $0x8] sm:$0xff]
  %v126 = vld [vmem:[%s69 + $0x10] sm:$0xff]
  %v127 = vld [vmem:[%s69 + $0x18] sm:$0xff]
  %v128 = vld [vmem:[%s69 + $0x20] sm:$0xff]
  %v129 = vld [vmem:[%s69 + $0x28] sm:$0xff]
  %v130 = vld [vmem:[%s69 + $0x30] sm:$0xff]
  %v131 = vld [vmem:[%s69 + $0x38] sm:$0xff]
  %s132 = scalar_lea.vmem %s69, 64
  %v133 = vld [vmem:[%s132] sm:$0xff]
  %v134 = vld [vmem:[%s132 + $0x8] sm:$0xff]
  %v135 = vld [vmem:[%s132 + $0x10] sm:$0xff]
  %v136 = vld [vmem:[%s132 + $0x18] sm:$0xff]
  %v137 = vld [vmem:[%s132 + $0x20] sm:$0xff]
  %v138 = vld [vmem:[%s132 + $0x28] sm:$0xff]
  %v139 = vld [vmem:[%s132 + $0x30] sm:$0xff]
  %v140 = vld [vmem:[%s132 + $0x38] sm:$0xff]
  %s141 = scalar_lea.vmem %s69, 128
  %v142 = vld [vmem:[%s141] sm:$0xff]
  %v143 = vld [vmem:[%s141 + $0x8] sm:$0xff]
  %v144 = vld [vmem:[%s141 + $0x10] sm:$0xff]
  %v145 = vld [vmem:[%s141 + $0x18] sm:$0xff]
  %v146 = vld [vmem:[%s141 + $0x20] sm:$0xff]
  %v147 = vld [vmem:[%s141 + $0x28] sm:$0xff]
  %v148 = vld [vmem:[%s141 + $0x30] sm:$0xff]
  %v149 = vld [vmem:[%s141 + $0x38] sm:$0xff]
  %v150 = vld [vmem:[%s77] sm:$0xff]
  %v151 = vld [vmem:[%s77 + $0x8] sm:$0xff]
  %v152 = vld [vmem:[%s77 + $0x10] sm:$0xff]
  %v153 = vld [vmem:[%s77 + $0x18] sm:$0xff]
  %v154 = vld [vmem:[%s77 + $0x20] sm:$0xff]
  %v155 = vld [vmem:[%s77 + $0x28] sm:$0xff]
  %v156 = vld [vmem:[%s77 + $0x30] sm:$0xff]
  %v157 = vld [vmem:[%s77 + $0x38] sm:$0xff]
  %s158 = scalar_lea.vmem %s77, 64
  %v159 = vld [vmem:[%s158] sm:$0xff]
  %v160 = vld [vmem:[%s158 + $0x8] sm:$0xff]
  %v161 = vld [vmem:[%s158 + $0x10] sm:$0xff]
  %v162 = vld [vmem:[%s158 + $0x18] sm:$0xff]
  %v163 = vld [vmem:[%s158 + $0x20] sm:$0xff]
  %v164 = vld [vmem:[%s158 + $0x28] sm:$0xff]
  %v165 = vld [vmem:[%s158 + $0x30] sm:$0xff]
  %v166 = vld [vmem:[%s158 + $0x38] sm:$0xff]
  %s167 = scalar_lea.vmem %s77, 128
  %v168 = vld [vmem:[%s167] sm:$0xff]
  %v169 = vld [vmem:[%s167 + $0x8] sm:$0xff]
  %v170 = vld [vmem:[%s167 + $0x10] sm:$0xff]
  %v171 = vld [vmem:[%s167 + $0x18] sm:$0xff]
  %v172 = vld [vmem:[%s167 + $0x20] sm:$0xff]
  %v173 = vld [vmem:[%s167 + $0x28] sm:$0xff]
  %v174 = vld [vmem:[%s167 + $0x30] sm:$0xff]
  %v175 = vld [vmem:[%s167 + $0x38] sm:$0xff]
  %s176 = scalar_lea.vmem %s77, 192
  %v177 = vld [vmem:[%s176] sm:$0xff]
  %v178 = vld [vmem:[%s176 + $0x8] sm:$0xff]
  %v179 = vld [vmem:[%s176 + $0x10] sm:$0xff]
  %v180 = vld [vmem:[%s176 + $0x18] sm:$0xff]
  %v181 = vld [vmem:[%s176 + $0x20] sm:$0xff]
  %v182 = vld [vmem:[%s176 + $0x28] sm:$0xff]
  %v183 = vld [vmem:[%s176 + $0x30] sm:$0xff]
  %v184 = vld [vmem:[%s176 + $0x38] sm:$0xff]
  %s185 = scalar_lea.vmem %s77, 256
  %v186 = vld [vmem:[%s185] sm:$0xff]
  %v187 = vld [vmem:[%s185 + $0x8] sm:$0xff]
  %v188 = vld [vmem:[%s185 + $0x10] sm:$0xff]
  %v189 = vld [vmem:[%s185 + $0x18] sm:$0xff]
  %v190 = vld [vmem:[%s185 + $0x20] sm:$0xff]
  %v191 = vld [vmem:[%s185 + $0x28] sm:$0xff]
  %v192 = vld [vmem:[%s185 + $0x30] sm:$0xff]
  %v193 = vld [vmem:[%s185 + $0x38] sm:$0xff]
  %s194 = scalar_lea.vmem %s77, 320
  %v195 = vld [vmem:[%s194] sm:$0xff]
  %v196 = vld [vmem:[%s194 + $0x8] sm:$0xff]
  %v197 = vld [vmem:[%s194 + $0x10] sm:$0xff]
  %v198 = vld [vmem:[%s194 + $0x18] sm:$0xff]
  %v199 = vld [vmem:[%s194 + $0x20] sm:$0xff]
  %v200 = vld [vmem:[%s194 + $0x28] sm:$0xff]
  %v201 = vld [vmem:[%s194 + $0x30] sm:$0xff]
  %v202 = vld [vmem:[%s194 + $0x38] sm:$0xff]
  %v203 = vand.u32 2147483647, %v116
  %v204 = vand.u32 2147483647, %v117
  %v205 = vand.u32 2147483647, %v118
  %v206 = vand.u32 2147483647, %v119
  %v207 = vand.u32 2147483647, %v120
  %v208 = vand.u32 2147483647, %v121
  %v209 = vand.u32 2147483647, %v122
  %v210 = vand.u32 2147483647, %v123
  %v211 = vmul.f32 %v124, %v124
  %v212 = vmul.f32 %v125, %v125
  %v213 = vmul.f32 %v126, %v126
  %v214 = vmul.f32 %v127, %v127
  %v215 = vmul.f32 %v128, %v128
  %v216 = vmul.f32 %v129, %v129
  %v217 = vmul.f32 %v130, %v130
  %v218 = vmul.f32 %v131, %v131
  %v219 = vmul.f32 %v133, %v133
  %v220 = vmul.f32 %v134, %v134
  %v221 = vmul.f32 %v135, %v135
  %v222 = vmul.f32 %v136, %v136
  %v223 = vmul.f32 %v137, %v137
  %v224 = vmul.f32 %v138, %v138
  %v225 = vmul.f32 %v139, %v139
  %v226 = vmul.f32 %v140, %v140
  %v227 = vmul.f32 %v142, %v142
  %v228 = vmul.f32 %v143, %v143
  %v229 = vmul.f32 %v144, %v144
  %v230 = vmul.f32 %v145, %v145
  %v231 = vmul.f32 %v146, %v146
  %v232 = vmul.f32 %v147, %v147
  %v233 = vmul.f32 %v148, %v148
  %v234 = vmul.f32 %v149, %v149
  %v235 = vadd.f32 %v211, %v219
  %v236 = vadd.f32 %v212, %v220
  %v237 = vadd.f32 %v213, %v221
  %v238 = vadd.f32 %v214, %v222
  %v239 = vadd.f32 %v215, %v223
  %v240 = vadd.f32 %v216, %v224
  %v241 = vadd.f32 %v217, %v225
  %v242 = vadd.f32 %v218, %v226
  %v243 = vadd.f32 %v235, %v227
  %v244 = vadd.f32 %v236, %v228
  %v245 = vadd.f32 %v237, %v229
  %v246 = vadd.f32 %v238, %v230
  %v247 = vadd.f32 %v239, %v231
  %v248 = vadd.f32 %v240, %v232
  %v249 = vadd.f32 %v241, %v233
  %v250 = vadd.f32 %v242, %v234
  %v251 = vmul.f32 %v177, %v195
  %v252 = vmul.f32 %v178, %v196
  %v253 = vmul.f32 %v179, %v197
  %v254 = vmul.f32 %v180, %v198
  %v255 = vmul.f32 %v181, %v199
  %v256 = vmul.f32 %v182, %v200
  %v257 = vmul.f32 %v183, %v201
  %v258 = vmul.f32 %v184, %v202
  %v259 = vmul.f32 %v186, %v186
  %v260 = vmul.f32 %v187, %v187
  %v261 = vmul.f32 %v188, %v188
  %v262 = vmul.f32 %v189, %v189
  %v263 = vmul.f32 %v190, %v190
  %v264 = vmul.f32 %v191, %v191
  %v265 = vmul.f32 %v192, %v192
  %v266 = vmul.f32 %v193, %v193
  %v267 = vsub.f32 %v251, %v259
  %v268 = vsub.f32 %v252, %v260
  %v269 = vsub.f32 %v253, %v261
  %v270 = vsub.f32 %v254, %v262
  %v271 = vsub.f32 %v255, %v263
  %v272 = vsub.f32 %v256, %v264
  %v273 = vsub.f32 %v257, %v265
  %v274 = vsub.f32 %v258, %v266
  %v275 = vmul.f32 %v150, %v195
  %v276 = vmul.f32 %v151, %v196
  %v277 = vmul.f32 %v152, %v197
  %v278 = vmul.f32 %v153, %v198
  %v279 = vmul.f32 %v154, %v199
  %v280 = vmul.f32 %v155, %v200
  %v281 = vmul.f32 %v156, %v201
  %v282 = vmul.f32 %v157, %v202
  %v283 = vmul.f32 %v168, %v168
  %v284 = vmul.f32 %v169, %v169
  %v285 = vmul.f32 %v170, %v170
  %v286 = vmul.f32 %v171, %v171
  %v287 = vmul.f32 %v172, %v172
  %v288 = vmul.f32 %v173, %v173
  %v289 = vmul.f32 %v174, %v174
  %v290 = vmul.f32 %v175, %v175
  %v291 = vsub.f32 %v275, %v283
  %v292 = vsub.f32 %v276, %v284
  %v293 = vsub.f32 %v277, %v285
  %v294 = vsub.f32 %v278, %v286
  %v295 = vsub.f32 %v279, %v287
  %v296 = vsub.f32 %v280, %v288
  %v297 = vsub.f32 %v281, %v289
  %v298 = vsub.f32 %v282, %v290
  %v299 = vmul.f32 %v150, %v177
  %v300 = vmul.f32 %v151, %v178
  %v301 = vmul.f32 %v152, %v179
  %v302 = vmul.f32 %v153, %v180
  %v303 = vmul.f32 %v154, %v181
  %v304 = vmul.f32 %v155, %v182
  %v305 = vmul.f32 %v156, %v183
  %v306 = vmul.f32 %v157, %v184
  %v307 = vmul.f32 %v159, %v159
  %v308 = vmul.f32 %v160, %v160
  %v309 = vmul.f32 %v161, %v161
  %v310 = vmul.f32 %v162, %v162
  %v311 = vmul.f32 %v163, %v163
  %v312 = vmul.f32 %v164, %v164
  %v313 = vmul.f32 %v165, %v165
  %v314 = vmul.f32 %v166, %v166
  %v315 = vsub.f32 %v299, %v307
  %v316 = vsub.f32 %v300, %v308
  %v317 = vsub.f32 %v301, %v309
  %v318 = vsub.f32 %v302, %v310
  %v319 = vsub.f32 %v303, %v311
  %v320 = vsub.f32 %v304, %v312
  %v321 = vsub.f32 %v305, %v313
  %v322 = vsub.f32 %v306, %v314
  %v323 = vmul.f32 %v168, %v186
  %v324 = vmul.f32 %v169, %v187
  %v325 = vmul.f32 %v170, %v188
  %v326 = vmul.f32 %v171, %v189
  %v327 = vmul.f32 %v172, %v190
  %v328 = vmul.f32 %v173, %v191
  %v329 = vmul.f32 %v174, %v192
  %v330 = vmul.f32 %v175, %v193
  %v331 = vmul.f32 %v159, %v195
  %v332 = vmul.f32 %v160, %v196
  %v333 = vmul.f32 %v161, %v197
  %v334 = vmul.f32 %v162, %v198
  %v335 = vmul.f32 %v163, %v199
  %v336 = vmul.f32 %v164, %v200
  %v337 = vmul.f32 %v165, %v201
  %v338 = vmul.f32 %v166, %v202
  %v339 = vsub.f32 %v323, %v331
  %v340 = vsub.f32 %v324, %v332
  %v341 = vsub.f32 %v325, %v333
  %v342 = vsub.f32 %v326, %v334
  %v343 = vsub.f32 %v327, %v335
  %v344 = vsub.f32 %v328, %v336
  %v345 = vsub.f32 %v329, %v337
  %v346 = vsub.f32 %v330, %v338
  %v347 = vmul.f32 %v159, %v186
  %v348 = vmul.f32 %v160, %v187
  %v349 = vmul.f32 %v161, %v188
  %v350 = vmul.f32 %v162, %v189
  %v351 = vmul.f32 %v163, %v190
  %v352 = vmul.f32 %v164, %v191
  %v353 = vmul.f32 %v165, %v192
  %v354 = vmul.f32 %v166, %v193
  %v355 = vmul.f32 %v168, %v177
  %v356 = vmul.f32 %v169, %v178
  %v357 = vmul.f32 %v170, %v179
  %v358 = vmul.f32 %v171, %v180
  %v359 = vmul.f32 %v172, %v181
  %v360 = vmul.f32 %v173, %v182
  %v361 = vmul.f32 %v174, %v183
  %v362 = vmul.f32 %v175, %v184
  %v363 = vsub.f32 %v347, %v355
  %v364 = vsub.f32 %v348, %v356
  %v365 = vsub.f32 %v349, %v357
  %v366 = vsub.f32 %v350, %v358
  %v367 = vsub.f32 %v351, %v359
  %v368 = vsub.f32 %v352, %v360
  %v369 = vsub.f32 %v353, %v361
  %v370 = vsub.f32 %v354, %v362
  %v371 = vmul.f32 %v159, %v168
  %v372 = vmul.f32 %v160, %v169
  %v373 = vmul.f32 %v161, %v170
  %v374 = vmul.f32 %v162, %v171
  %v375 = vmul.f32 %v163, %v172
  %v376 = vmul.f32 %v164, %v173
  %v377 = vmul.f32 %v165, %v174
  %v378 = vmul.f32 %v166, %v175
  %v379 = vmul.f32 %v150, %v186
  %v380 = vmul.f32 %v151, %v187
  %v381 = vmul.f32 %v152, %v188
  %v382 = vmul.f32 %v153, %v189
  %v383 = vmul.f32 %v154, %v190
  %v384 = vmul.f32 %v155, %v191
  %v385 = vmul.f32 %v156, %v192
  %v386 = vmul.f32 %v157, %v193
  %v387 = vsub.f32 %v371, %v379
  %v388 = vsub.f32 %v372, %v380
  %v389 = vsub.f32 %v373, %v381
  %v390 = vsub.f32 %v374, %v382
  %v391 = vsub.f32 %v375, %v383
  %v392 = vsub.f32 %v376, %v384
  %v393 = vsub.f32 %v377, %v385
  %v394 = vsub.f32 %v378, %v386
  %v395 = vmul.f32 %v211, %v267
  %v396 = vmul.f32 %v212, %v268
  %v397 = vmul.f32 %v213, %v269
  %v398 = vmul.f32 %v214, %v270
  %v399 = vmul.f32 %v215, %v271
  %v400 = vmul.f32 %v216, %v272
  %v401 = vmul.f32 %v217, %v273
  %v402 = vmul.f32 %v218, %v274
  %v403 = vmul.f32 %v219, %v291
  %v404 = vmul.f32 %v220, %v292
  %v405 = vmul.f32 %v221, %v293
  %v406 = vmul.f32 %v222, %v294
  %v407 = vmul.f32 %v223, %v295
  %v408 = vmul.f32 %v224, %v296
  %v409 = vmul.f32 %v225, %v297
  %v410 = vmul.f32 %v226, %v298
  %v411 = vadd.f32 %v395, %v403
  %v412 = vadd.f32 %v396, %v404
  %v413 = vadd.f32 %v397, %v405
  %v414 = vadd.f32 %v398, %v406
  %v415 = vadd.f32 %v399, %v407
  %v416 = vadd.f32 %v400, %v408
  %v417 = vadd.f32 %v401, %v409
  %v418 = vadd.f32 %v402, %v410
  %v419 = vmul.f32 %v227, %v315
  %v420 = vmul.f32 %v228, %v316
  %v421 = vmul.f32 %v229, %v317
  %v422 = vmul.f32 %v230, %v318
  %v423 = vmul.f32 %v231, %v319
  %v424 = vmul.f32 %v232, %v320
  %v425 = vmul.f32 %v233, %v321
  %v426 = vmul.f32 %v234, %v322
  %v427 = vadd.f32 %v411, %v419
  %v428 = vadd.f32 %v412, %v420
  %v429 = vadd.f32 %v413, %v421
  %v430 = vadd.f32 %v414, %v422
  %v431 = vadd.f32 %v415, %v423
  %v432 = vadd.f32 %v416, %v424
  %v433 = vadd.f32 %v417, %v425
  %v434 = vadd.f32 %v418, %v426
  %v435 = vmul.f32 %v124, %v133
  %v436 = vmul.f32 %v125, %v134
  %v437 = vmul.f32 %v126, %v135
  %v438 = vmul.f32 %v127, %v136
  %v439 = vmul.f32 %v128, %v137
  %v440 = vmul.f32 %v129, %v138
  %v441 = vmul.f32 %v130, %v139
  %v442 = vmul.f32 %v131, %v140
  %v443 = vmul.f32 %v435, %v339
  %v444 = vmul.f32 %v436, %v340
  %v445 = vmul.f32 %v437, %v341
  %v446 = vmul.f32 %v438, %v342
  %v447 = vmul.f32 %v439, %v343
  %v448 = vmul.f32 %v440, %v344
  %v449 = vmul.f32 %v441, %v345
  %v450 = vmul.f32 %v442, %v346
  %v451 = vmul.f32 %v124, %v142
  %v452 = vmul.f32 %v125, %v143
  %v453 = vmul.f32 %v126, %v144
  %v454 = vmul.f32 %v127, %v145
  %v455 = vmul.f32 %v128, %v146
  %v456 = vmul.f32 %v129, %v147
  %v457 = vmul.f32 %v130, %v148
  %v458 = vmul.f32 %v131, %v149
  %v459 = vmul.f32 %v451, %v363
  %v460 = vmul.f32 %v452, %v364
  %v461 = vmul.f32 %v453, %v365
  %v462 = vmul.f32 %v454, %v366
  %v463 = vmul.f32 %v455, %v367
  %v464 = vmul.f32 %v456, %v368
  %v465 = vmul.f32 %v457, %v369
  %v466 = vmul.f32 %v458, %v370
  %v467 = vadd.f32 %v443, %v459
  %v468 = vadd.f32 %v444, %v460
  %v469 = vadd.f32 %v445, %v461
  %v470 = vadd.f32 %v446, %v462
  %v471 = vadd.f32 %v447, %v463
  %v472 = vadd.f32 %v448, %v464
  %v473 = vadd.f32 %v449, %v465
  %v474 = vadd.f32 %v450, %v466
  %v475 = vmul.f32 %v133, %v142
  %v476 = vmul.f32 %v134, %v143
  %v477 = vmul.f32 %v135, %v144
  %v478 = vmul.f32 %v136, %v145
  %v479 = vmul.f32 %v137, %v146
  %v480 = vmul.f32 %v138, %v147
  %v481 = vmul.f32 %v139, %v148
  %v482 = vmul.f32 %v140, %v149
  %v483 = vmul.f32 %v475, %v387
  %v484 = vmul.f32 %v476, %v388
  %v485 = vmul.f32 %v477, %v389
  %v486 = vmul.f32 %v478, %v390
  %v487 = vmul.f32 %v479, %v391
  %v488 = vmul.f32 %v480, %v392
  %v489 = vmul.f32 %v481, %v393
  %v490 = vmul.f32 %v482, %v394
  %v491 = vadd.f32 %v467, %v483
  %v492 = vadd.f32 %v468, %v484
  %v493 = vadd.f32 %v469, %v485
  %v494 = vadd.f32 %v470, %v486
  %v495 = vadd.f32 %v471, %v487
  %v496 = vadd.f32 %v472, %v488
  %v497 = vadd.f32 %v473, %v489
  %v498 = vadd.f32 %v474, %v490
  %v499 = vmul.f32 %v491, 2.0
  %v500 = vmul.f32 %v492, 2.0
  %v501 = vmul.f32 %v493, 2.0
  %v502 = vmul.f32 %v494, 2.0
  %v503 = vmul.f32 %v495, 2.0
  %v504 = vmul.f32 %v496, 2.0
  %v505 = vmul.f32 %v497, 2.0
  %v506 = vmul.f32 %v498, 2.0
  %v507 = vadd.f32 %v427, %v499
  %v508 = vadd.f32 %v428, %v500
  %v509 = vadd.f32 %v429, %v501
  %v510 = vadd.f32 %v430, %v502
  %v511 = vadd.f32 %v431, %v503
  %v512 = vadd.f32 %v432, %v504
  %v513 = vadd.f32 %v433, %v505
  %v514 = vadd.f32 %v434, %v506
  %v515 = vsub.f32 0.0, %v507
  %v516 = vsub.f32 0.0, %v508
  %v517 = vsub.f32 0.0, %v509
  %v518 = vsub.f32 0.0, %v510
  %v519 = vsub.f32 0.0, %v511
  %v520 = vsub.f32 0.0, %v512
  %v521 = vsub.f32 0.0, %v513
  %v522 = vsub.f32 0.0, %v514
  %v523 = vadd.f32 %v243, 1e-12
  %v524 = vadd.f32 %v244, 1e-12
  %v525 = vadd.f32 %v245, 1e-12
  %v526 = vadd.f32 %v246, 1e-12
  %v527 = vadd.f32 %v247, 1e-12
  %v528 = vadd.f32 %v248, 1e-12
  %v529 = vadd.f32 %v249, 1e-12
  %v530 = vadd.f32 %v250, 1e-12
  %v531 = vrcp.pop %v523
  %v532 = vrcp.pop %v524
  %v533 = vrcp.pop %v525
  %v534 = vrcp.pop %v526
  %v535 = vrcp.pop %v527
  %v536 = vrcp.pop %v528
  %v537 = vrcp.pop %v529
  %v538 = vrcp.pop %v530
  %v539 = vmul.f32 %v523, %v531
  %v540 = vmul.f32 %v524, %v532
  %v541 = vmul.f32 %v525, %v533
  %v542 = vmul.f32 %v526, %v534
  %v543 = vmul.f32 %v527, %v535
  %v544 = vmul.f32 %v528, %v536
  %v545 = vmul.f32 %v529, %v537
  %v546 = vmul.f32 %v530, %v538
  %v547 = vsub.f32 2.0, %v539
  %v548 = vsub.f32 2.0, %v540
  %v549 = vsub.f32 2.0, %v541
  %v550 = vsub.f32 2.0, %v542
  %v551 = vsub.f32 2.0, %v543
  %v552 = vsub.f32 2.0, %v544
  %v553 = vsub.f32 2.0, %v545
  %v554 = vsub.f32 2.0, %v546
  %v555 = vmul.f32 %v531, %v547
  %v556 = vmul.f32 %v532, %v548
  %v557 = vmul.f32 %v533, %v549
  %v558 = vmul.f32 %v534, %v550
  %v559 = vmul.f32 %v535, %v551
  %v560 = vmul.f32 %v536, %v552
  %v561 = vmul.f32 %v537, %v553
  %v562 = vmul.f32 %v538, %v554
  %v563 = vmul.f32 %v523, %v555
  %v564 = vmul.f32 %v524, %v556
  %v565 = vmul.f32 %v525, %v557
  %v566 = vmul.f32 %v526, %v558
  %v567 = vmul.f32 %v527, %v559
  %v568 = vmul.f32 %v528, %v560
  %v569 = vmul.f32 %v529, %v561
  %v570 = vmul.f32 %v530, %v562
  %v571 = vsub.f32 2.0, %v563
  %v572 = vsub.f32 2.0, %v564
  %v573 = vsub.f32 2.0, %v565
  %v574 = vsub.f32 2.0, %v566
  %v575 = vsub.f32 2.0, %v567
  %v576 = vsub.f32 2.0, %v568
  %v577 = vsub.f32 2.0, %v569
  %v578 = vsub.f32 2.0, %v570
  %v579 = vmul.f32 %v555, %v571
  %v580 = vmul.f32 %v556, %v572
  %v581 = vmul.f32 %v557, %v573
  %v582 = vmul.f32 %v558, %v574
  %v583 = vmul.f32 %v559, %v575
  %v584 = vmul.f32 %v560, %v576
  %v585 = vmul.f32 %v561, %v577
  %v586 = vmul.f32 %v562, %v578
  %v587 = vld [vmem:[%s3] sm:$0xff]
  %v588 = vld [vmem:[%s3 + $0x8] sm:$0xff]
  %v589 = vld [vmem:[%s3 + $0x10] sm:$0xff]
  %v590 = vld [vmem:[%s3 + $0x18] sm:$0xff]
  %v591 = vld [vmem:[%s3 + $0x20] sm:$0xff]
  %v592 = vld [vmem:[%s3 + $0x28] sm:$0xff]
  %v593 = vld [vmem:[%s3 + $0x30] sm:$0xff]
  %v594 = vld [vmem:[%s3 + $0x38] sm:$0xff]
  %v595 = vadd.f32 %v587, %v203
  %v596 = vadd.f32 %v588, %v204
  %v597 = vadd.f32 %v589, %v205
  %v598 = vadd.f32 %v590, %v206
  %v599 = vadd.f32 %v591, %v207
  %v600 = vadd.f32 %v592, %v208
  %v601 = vadd.f32 %v593, %v209
  %v602 = vadd.f32 %v594, %v210
  %603 = vst [vmem:[%s3] sm:$0xff] %v595
  %604 = vst [vmem:[%s3 + $0x8] sm:$0xff] %v596
  %605 = vst [vmem:[%s3 + $0x10] sm:$0xff] %v597
  %606 = vst [vmem:[%s3 + $0x18] sm:$0xff] %v598
  %607 = vst [vmem:[%s3 + $0x20] sm:$0xff] %v599
  %608 = vst [vmem:[%s3 + $0x28] sm:$0xff] %v600
  %609 = vst [vmem:[%s3 + $0x30] sm:$0xff] %v601
  %610 = vst [vmem:[%s3 + $0x38] sm:$0xff] %v602
  %s611 = scalar_lea.vmem %s3, 64
  %v612 = vld [vmem:[%s611] sm:$0xff]
  %v613 = vld [vmem:[%s611 + $0x8] sm:$0xff]
  %v614 = vld [vmem:[%s611 + $0x10] sm:$0xff]
  %v615 = vld [vmem:[%s611 + $0x18] sm:$0xff]
  %v616 = vld [vmem:[%s611 + $0x20] sm:$0xff]
  %v617 = vld [vmem:[%s611 + $0x28] sm:$0xff]
  %v618 = vld [vmem:[%s611 + $0x30] sm:$0xff]
  %v619 = vld [vmem:[%s611 + $0x38] sm:$0xff]
  %v620 = vmul.f32 %v203, -100.0
  %v621 = vmul.f32 %v204, -100.0
  %v622 = vmul.f32 %v205, -100.0
  %v623 = vmul.f32 %v206, -100.0
  %v624 = vmul.f32 %v207, -100.0
  %v625 = vmul.f32 %v208, -100.0
  %v626 = vmul.f32 %v209, -100.0
  %v627 = vmul.f32 %v210, -100.0
  %v628 = vmul.f32 %v620, 1.442695
  %v629 = vpow.pop %v628
  %v630 = vmul.f32 %v621, 1.442695
  %v631 = vpow.pop %v630
  %v632 = vmul.f32 %v622, 1.442695
  %v633 = vpow.pop %v632
  %v634 = vmul.f32 %v623, 1.442695
  %v635 = vpow.pop %v634
  %v636 = vmul.f32 %v624, 1.442695
  %v637 = vpow.pop %v636
  %v638 = vmul.f32 %v625, 1.442695
  %v639 = vpow.pop %v638
  %v640 = vmul.f32 %v626, 1.442695
  %v641 = vpow.pop %v640
  %v642 = vmul.f32 %v627, 1.442695
  %v643 = vpow.pop %v642
  %v644 = vadd.f32 %v612, %v629
  %v645 = vadd.f32 %v613, %v631
  %v646 = vadd.f32 %v614, %v633
  %v647 = vadd.f32 %v615, %v635
  %v648 = vadd.f32 %v616, %v637
  %v649 = vadd.f32 %v617, %v639
  %v650 = vadd.f32 %v618, %v641
  %v651 = vadd.f32 %v619, %v643
  %652 = vst [vmem:[%s611] sm:$0xff] %v644
  %653 = vst [vmem:[%s611 + $0x8] sm:$0xff] %v645
  %654 = vst [vmem:[%s611 + $0x10] sm:$0xff] %v646
  %655 = vst [vmem:[%s611 + $0x18] sm:$0xff] %v647
  %656 = vst [vmem:[%s611 + $0x20] sm:$0xff] %v648
  %657 = vst [vmem:[%s611 + $0x28] sm:$0xff] %v649
  %658 = vst [vmem:[%s611 + $0x30] sm:$0xff] %v650
  %659 = vst [vmem:[%s611 + $0x38] sm:$0xff] %v651
  %s660 = scalar_lea.vmem %s3, 128
  %v661 = vld [vmem:[%s660] sm:$0xff]
  %v662 = vld [vmem:[%s660 + $0x8] sm:$0xff]
  %v663 = vld [vmem:[%s660 + $0x10] sm:$0xff]
  %v664 = vld [vmem:[%s660 + $0x18] sm:$0xff]
  %v665 = vld [vmem:[%s660 + $0x20] sm:$0xff]
  %v666 = vld [vmem:[%s660 + $0x28] sm:$0xff]
  %v667 = vld [vmem:[%s660 + $0x30] sm:$0xff]
  %v668 = vld [vmem:[%s660 + $0x38] sm:$0xff]
  %v669 = vrsqrt.pop %v243
  %v670 = vmul.f32 %v669, %v243
  %v671 = vmul.f32 %v670, %v669
  %v672 = vmul.f32 0.5, %v671
  %v673 = vsub.f32 1.5, %v672
  %v674 = vmul.f32 %v669, %v673
  %v675 = vmul.f32 %v243, %v674
  %vm676 = vcmp.eq.f32.partialorder %v243, inf
  %v677 = vsel %vm676, %v243, %v675
  %vm678 = vcmp.eq.f32.partialorder %v243, 0.0
  %v679 = vand.u32 %v243, 2147483648
  %v680 = vsel %vm678, %v679, %v677
  %v681 = vrsqrt.pop %v244
  %v682 = vmul.f32 %v681, %v244
  %v683 = vmul.f32 %v682, %v681
  %v684 = vmul.f32 0.5, %v683
  %v685 = vsub.f32 1.5, %v684
  %v686 = vmul.f32 %v681, %v685
  %v687 = vmul.f32 %v244, %v686
  %vm688 = vcmp.eq.f32.partialorder %v244, inf
  %v689 = vsel %vm688, %v244, %v687
  %vm690 = vcmp.eq.f32.partialorder %v244, 0.0
  %v691 = vand.u32 %v244, 2147483648
  %v692 = vsel %vm690, %v691, %v689
  %v693 = vrsqrt.pop %v245
  %v694 = vmul.f32 %v693, %v245
  %v695 = vmul.f32 %v694, %v693
  %v696 = vmul.f32 0.5, %v695
  %v697 = vsub.f32 1.5, %v696
  %v698 = vmul.f32 %v693, %v697
  %v699 = vmul.f32 %v245, %v698
  %vm700 = vcmp.eq.f32.partialorder %v245, inf
  %v701 = vsel %vm700, %v245, %v699
  %vm702 = vcmp.eq.f32.partialorder %v245, 0.0
  %v703 = vand.u32 %v245, 2147483648
  %v704 = vsel %vm702, %v703, %v701
  %v705 = vrsqrt.pop %v246
  %v706 = vmul.f32 %v705, %v246
  %v707 = vmul.f32 %v706, %v705
  %v708 = vmul.f32 0.5, %v707
  %v709 = vsub.f32 1.5, %v708
  %v710 = vmul.f32 %v705, %v709
  %v711 = vmul.f32 %v246, %v710
  %vm712 = vcmp.eq.f32.partialorder %v246, inf
  %v713 = vsel %vm712, %v246, %v711
  %vm714 = vcmp.eq.f32.partialorder %v246, 0.0
  %v715 = vand.u32 %v246, 2147483648
  %v716 = vsel %vm714, %v715, %v713
  %v717 = vrsqrt.pop %v247
  %v718 = vmul.f32 %v717, %v247
  %v719 = vmul.f32 %v718, %v717
  %v720 = vmul.f32 0.5, %v719
  %v721 = vsub.f32 1.5, %v720
  %v722 = vmul.f32 %v717, %v721
  %v723 = vmul.f32 %v247, %v722
  %vm724 = vcmp.eq.f32.partialorder %v247, inf
  %v725 = vsel %vm724, %v247, %v723
  %vm726 = vcmp.eq.f32.partialorder %v247, 0.0
  %v727 = vand.u32 %v247, 2147483648
  %v728 = vsel %vm726, %v727, %v725
  %v729 = vrsqrt.pop %v248
  %v730 = vmul.f32 %v729, %v248
  %v731 = vmul.f32 %v730, %v729
  %v732 = vmul.f32 0.5, %v731
  %v733 = vsub.f32 1.5, %v732
  %v734 = vmul.f32 %v729, %v733
  %v735 = vmul.f32 %v248, %v734
  %vm736 = vcmp.eq.f32.partialorder %v248, inf
  %v737 = vsel %vm736, %v248, %v735
  %vm738 = vcmp.eq.f32.partialorder %v248, 0.0
  %v739 = vand.u32 %v248, 2147483648
  %v740 = vsel %vm738, %v739, %v737
  %v741 = vrsqrt.pop %v249
  %v742 = vmul.f32 %v741, %v249
  %v743 = vmul.f32 %v742, %v741
  %v744 = vmul.f32 0.5, %v743
  %v745 = vsub.f32 1.5, %v744
  %v746 = vmul.f32 %v741, %v745
  %v747 = vmul.f32 %v249, %v746
  %vm748 = vcmp.eq.f32.partialorder %v249, inf
  %v749 = vsel %vm748, %v249, %v747
  %vm750 = vcmp.eq.f32.partialorder %v249, 0.0
  %v751 = vand.u32 %v249, 2147483648
  %v752 = vsel %vm750, %v751, %v749
  %v753 = vrsqrt.pop %v250
  %v754 = vmul.f32 %v753, %v250
  %v755 = vmul.f32 %v754, %v753
  %v756 = vmul.f32 0.5, %v755
  %v757 = vsub.f32 1.5, %v756
  %v758 = vmul.f32 %v753, %v757
  %v759 = vmul.f32 %v250, %v758
  %vm760 = vcmp.eq.f32.partialorder %v250, inf
  %v761 = vsel %vm760, %v250, %v759
  %vm762 = vcmp.eq.f32.partialorder %v250, 0.0
  %v763 = vand.u32 %v250, 2147483648
  %v764 = vsel %vm762, %v763, %v761
  %v765 = vsub.f32 %v680, 1.0
  %v766 = vsub.f32 %v692, 1.0
  %v767 = vsub.f32 %v704, 1.0
  %v768 = vsub.f32 %v716, 1.0
  %v769 = vsub.f32 %v728, 1.0
  %v770 = vsub.f32 %v740, 1.0
  %v771 = vsub.f32 %v752, 1.0
  %v772 = vsub.f32 %v764, 1.0
  %v773 = vand.u32 2147483647, %v765
  %v774 = vand.u32 2147483647, %v766
  %v775 = vand.u32 2147483647, %v767
  %v776 = vand.u32 2147483647, %v768
  %v777 = vand.u32 2147483647, %v769
  %v778 = vand.u32 2147483647, %v770
  %v779 = vand.u32 2147483647, %v771
  %v780 = vand.u32 2147483647, %v772
  %v781 = vadd.f32 %v661, %v773
  %v782 = vadd.f32 %v662, %v774
  %v783 = vadd.f32 %v663, %v775
  %v784 = vadd.f32 %v664, %v776
  %v785 = vadd.f32 %v665, %v777
  %v786 = vadd.f32 %v666, %v778
  %v787 = vadd.f32 %v667, %v779
  %v788 = vadd.f32 %v668, %v780
  %789 = vst [vmem:[%s660] sm:$0xff] %v781
  %790 = vst [vmem:[%s660 + $0x8] sm:$0xff] %v782
  %791 = vst [vmem:[%s660 + $0x10] sm:$0xff] %v783
  %792 = vst [vmem:[%s660 + $0x18] sm:$0xff] %v784
  %793 = vst [vmem:[%s660 + $0x20] sm:$0xff] %v785
  %794 = vst [vmem:[%s660 + $0x28] sm:$0xff] %v786
  %795 = vst [vmem:[%s660 + $0x30] sm:$0xff] %v787
  %796 = vst [vmem:[%s660 + $0x38] sm:$0xff] %v788
  %s797 = scalar_lea.vmem %s3, 192
  %v798 = vld [vmem:[%s797] sm:$0xff]
  %v799 = vld [vmem:[%s797 + $0x8] sm:$0xff]
  %v800 = vld [vmem:[%s797 + $0x10] sm:$0xff]
  %v801 = vld [vmem:[%s797 + $0x18] sm:$0xff]
  %v802 = vld [vmem:[%s797 + $0x20] sm:$0xff]
  %v803 = vld [vmem:[%s797 + $0x28] sm:$0xff]
  %v804 = vld [vmem:[%s797 + $0x30] sm:$0xff]
  %v805 = vld [vmem:[%s797 + $0x38] sm:$0xff]
  %v806 = vmul.f32 %v515, %v579
  %v807 = vmul.f32 %v516, %v580
  %v808 = vmul.f32 %v517, %v581
  %v809 = vmul.f32 %v518, %v582
  %v810 = vmul.f32 %v519, %v583
  %v811 = vmul.f32 %v520, %v584
  %v812 = vmul.f32 %v521, %v585
  %v813 = vmul.f32 %v522, %v586
  %v814 = vand.u32 2147483647, %v806
  %v815 = vand.u32 2147483647, %v807
  %v816 = vand.u32 2147483647, %v808
  %v817 = vand.u32 2147483647, %v809
  %v818 = vand.u32 2147483647, %v810
  %v819 = vand.u32 2147483647, %v811
  %v820 = vand.u32 2147483647, %v812
  %v821 = vand.u32 2147483647, %v813
  %v822 = vadd.f32 %v798, %v814
  %v823 = vadd.f32 %v799, %v815
  %v824 = vadd.f32 %v800, %v816
  %v825 = vadd.f32 %v801, %v817
  %v826 = vadd.f32 %v802, %v818
  %v827 = vadd.f32 %v803, %v819
  %v828 = vadd.f32 %v804, %v820
  %v829 = vadd.f32 %v805, %v821
  %830 = vst [vmem:[%s797] sm:$0xff] %v822
  %831 = vst [vmem:[%s797 + $0x8] sm:$0xff] %v823
  %832 = vst [vmem:[%s797 + $0x10] sm:$0xff] %v824
  %833 = vst [vmem:[%s797 + $0x18] sm:$0xff] %v825
  %834 = vst [vmem:[%s797 + $0x20] sm:$0xff] %v826
  %835 = vst [vmem:[%s797 + $0x28] sm:$0xff] %v827
  %836 = vst [vmem:[%s797 + $0x30] sm:$0xff] %v828
  %837 = vst [vmem:[%s797 + $0x38] sm:$0xff] %v829
  // Predicated region
  $region18: #{morse_loss.2} parent=0 // pred_check
    _
  $region19: #{morse_loss.2} parent=0 // pred_check_branch
    %839 = sbr.rel (0) target = $region21
  $region20: #{morse_loss.2} parent=0 // pred_region
    _
  $region21: #{morse_loss.2} parent=0 // pred_fallthru
    _
  // Predicated region
  $region22: #{morse_loss.2} parent=0 // pred_check
    _
  $region23: #{morse_loss.2} parent=0 // pred_check_branch
    %841 = sbr.rel (0) target = $region25
  $region24: #{morse_loss.2} parent=0 // pred_region
    _
  $region25: #{morse_loss.2} parent=0 // pred_fallthru
    _

</llo_original>
